<compile_context>
chip_gen: v7x
topology: tpu7x:2x2x1
jax: 0.10.0
libtpu: 0.0.40
codegen_flags: <defaults>
</compile_context>

<pallas_src>
import functools
from typing import NamedTuple

import jax
import jax.numpy as jnp
from jax.experimental import pallas as pl
from jax.experimental.pallas import tpu as pltpu

_LANE = 128      # lane width: pad all feature dims to this
_SUBLANE = 16    # batch rows padded to bf16-native sublane tile

# Cached capability probe: does this jax/Mosaic accept Buffered(1) resident specs?
_RESIDENT_SINGLE_BUFFER_OK = None


def _round_up(n, m):
    return ((n + m - 1) // m) * m


def _layernorm_padded(h, gamma, beta, n_true, eps=1e-5):
    """LayerNorm over a lane-padded feature axis.

    Padded feature columns of `h` are exactly zero (padded weight columns and
    bias are zero), so full-width sums equal true-width sums; normalize by the
    TRUE feature count.  gamma/beta are zero-padded, so padded columns of the
    result come out exactly zero again.
    """
    inv_n = 1.0 / float(n_true)
    s1 = jnp.sum(h, axis=-1, keepdims=True)
    s2 = jnp.sum(h * h, axis=-1, keepdims=True)
    mu = s1 * inv_n
    var = jnp.maximum(s2 * inv_n - mu * mu, 0.0)   # clamp: one-pass cancellation
    return (h - mu) * jax.lax.rsqrt(var + eps) * gamma + beta


def actor_kernel(x_ref,
                 w1_ref, b1_ref, g1_ref, be1_ref,
                 w2_ref, b2_ref, g2_ref, be2_ref,
                 w3_ref, b3_ref,
                 out_ref,
                 *, normalize: bool, hidden_true: int, compute_dtype):
    x = x_ref[...]                                           # (tb, Sp) compute_dtype

    # fc1 -> ln1 -> relu  (MXU in compute_dtype, f32 accumulate, f32 elementwise)
    h = jnp.dot(x, w1_ref[...], preferred_element_type=jnp.float32) + b1_ref[...]
    h = _layernorm_padded(h, g1_ref[...], be1_ref[...], hidden_true)
    h = jnp.maximum(h, 0.0).astype(compute_dtype)            # fused relu + downcast

    # fc2 -> ln2 -> relu
    h = jnp.dot(h, w2_ref[...], preferred_element_type=jnp.float32) + b2_ref[...]
    h = _layernorm_padded(h, g2_ref[...], be2_ref[...], hidden_true)
    h = jnp.maximum(h, 0.0).astype(compute_dtype)

    # fc3 (-> tanh)
    y = jnp.dot(h, w3_ref[...], preferred_element_type=jnp.float32) + b3_ref[...]
    if normalize:
        y = jnp.tanh(y)
    out_ref[...] = y.astype(out_ref.dtype)


class PreparedActorParams(NamedTuple):
    """Lane-padded, MXU-dtype parameters (pad/cast done once, not per forward)."""
    w1: jax.Array
    b1: jax.Array
    g1: jax.Array
    be1: jax.Array
    w2: jax.Array
    b2: jax.Array
    g2: jax.Array
    be2: jax.Array
    w3: jax.Array
    b3: jax.Array
    state_size: int
    hidden_size: int
    action_size: int
    compute_dtype: type


def prepare_params(params, use_bf16: bool = True) -> PreparedActorParams:
    """Pad feature dims to the 128-lane width and cast weights to the MXU dtype.

    Weights are stored transposed vs. PyTorch, i.e. (in_features, out_features);
    biases / LayerNorm params are (1, features) rows (kept in f32).
    """
    (w1, b1, g1, be1, w2, b2, g2, be2, w3, b3) = params
    S, H = w1.shape
    A = w3.shape[1]
    Sp, Hp, Ap = _round_up(S, _LANE), _round_up(H, _LANE), _round_up(A, _LANE)
    cdt = jnp.bfloat16 if use_bf16 else jnp.float32

    def pad2(a, rows, cols, dtype=jnp.float32):
        a = a.astype(dtype)
        return jnp.pad(a, ((0, rows - a.shape[0]), (0, cols - a.shape[1])))

    return PreparedActorParams(
        w1=pad2(w1, Sp, Hp, cdt), b1=pad2(b1, 1, Hp),
        g1=pad2(g1, 1, Hp), be1=pad2(be1, 1, Hp),
        w2=pad2(w2, Hp, Hp, cdt), b2=pad2(b2, 1, Hp),
        g2=pad2(g2, 1, Hp), be2=pad2(be2, 1, Hp),
        w3=pad2(w3, Hp, Ap, cdt), b3=pad2(b3, 1, Ap),
        state_size=S, hidden_size=H, action_size=A, compute_dtype=cdt)


def actor_forward(x, prepared: PreparedActorParams, normalize: bool = True,
                  tile_b: int = 512, x_buffers: int = 2,
                  out_dtype=jnp.float32):
    """ActorNetwork forward as one batch-tiled Pallas kernel.

    tile_b guidance: 512-1024 on v5e/v6e (128 MiB VMEM), 256-512 on v7x
    (64 MiB per TC).  x_buffers=3 on v7x if the streamed batch-tile DMA is
    exposed in a profile.
    """
    global _RESIDENT_SINGLE_BUFFER_OK

    B, S = x.shape
    p = prepared
    assert S == p.state_size, "state_size mismatch with prepared params"
    H, A = p.hidden_size, p.action_size
    Sp, Hp = p.w1.shape
    Ap = p.w3.shape[1]
    cdt = p.compute_dtype

    # Batch padding: only to the 16-row sublane tile; pick tb that divides Bp
    # exactly so the last tile carries at most 15 throwaway rows.
    Bp = _round_up(B, _SUBLANE)
    tb = max(_SUBLANE, min(_round_up(tile_b, _SUBLANE), Bp))
    while Bp % tb:
        tb -= _SUBLANE

    xp = jnp.pad(x.astype(cdt), ((0, Bp - B), (0, Sp - S)))

    operands = (xp, p.w1, p.b1, p.g1, p.be1,
                p.w2, p.b2, p.g2, p.be2, p.w3, p.b3)

    kernel = functools.partial(actor_kernel, normalize=normalize,
                               hidden_true=H, compute_dtype=cdt)

    # --- explicit VMEM budget (conservative: residents counted double-buffered
    # in case the Buffered(1) fallback is taken) ------------------------------
    cbytes = jnp.dtype(cdt).itemsize
    obytes = jnp.dtype(out_dtype).itemsize
    resident_bytes = (Sp * Hp + Hp * Hp + Hp * Ap) * cbytes + (6 * Hp + Ap) * 4
    stream_bytes = max(2, x_buffers) * tb * Sp * cbytes + 2 * tb * Ap * obytes
    interm_bytes = 4 * tb * Hp * 4            # f32 intermediates inside the body
    vmem_limit = int(1.5 * (2 * resident_bytes + stream_bytes + interm_bytes))
    vmem_limit = min(max(vmem_limit, 16 << 20), 100 << 20)

    compiler_params = pltpu.CompilerParams(
        dimension_semantics=("parallel",),
        vmem_limit_bytes=vmem_limit)

    cost = pl.CostEstimate(
        flops=2 * B * (S * H + H * H + H * A),
        transcendentals=B * ((A if normalize else 0) + 2),   # tanh + 2 rsqrt/row
        bytes_accessed=sum(int(a.size) * a.dtype.itemsize for a in operands)
        + Bp * Ap * obytes,
    )

    def build_and_call(single_buffer_residents: bool):
        if x_buffers > 2:
            x_spec = pl.BlockSpec((tb, Sp), lambda i: (i, 0),
                                  pipeline_mode=pl.Buffered(x_buffers))
        else:
            x_spec = pl.BlockSpec((tb, Sp), lambda i: (i, 0))
        out_spec = pl.BlockSpec((tb, Ap), lambda i: (i, 0))

        def resident(a):
            # Constant index_map => block never changes; single buffer suffices.
            if single_buffer_residents:
                return pl.BlockSpec(a.shape, lambda i: (0, 0),
                                    pipeline_mode=pl.Buffered(1))
            return pl.BlockSpec(a.shape, lambda i: (0, 0))

        return pl.pallas_call(
            kernel,
            out_shape=jax.ShapeDtypeStruct((Bp, Ap), out_dtype),
            grid=(Bp // tb,),
            in_specs=[x_spec] + [resident(a) for a in operands[1:]],
            out_specs=out_spec,
            compiler_params=compiler_params,
            cost_estimate=cost,
        )(*operands)

    if _RESIDENT_SINGLE_BUFFER_OK is None:
        try:
            out_padded = jax.block_until_ready(build_and_call(True))
            _RESIDENT_SINGLE_BUFFER_OK = True
        except Exception:
            _RESIDENT_SINGLE_BUFFER_OK = False
            out_padded = build_and_call(False)
    else:
        out_padded = build_and_call(_RESIDENT_SINGLE_BUFFER_OK)

    return out_padded[:B, :A]


def init_params(key, state_size, hidden_size, action_size):
    """PyTorch-style default init: Linear uniform +/- 1/sqrt(fan_in),
    LayerNorm gamma=1 / beta=0. Weights stored (in, out)."""
    ks = jax.random.split(key, 6)

    def linear(kw, kb, fan_in, fan_out):
        bound = 1.0 / jnp.sqrt(fan_in)
        w = jax.random.uniform(kw, (fan_in, fan_out), jnp.float32, -bound, bound)
        b = jax.random.uniform(kb, (1, fan_out), jnp.float32, -bound, bound)
        return w, b

    w1, b1 = linear(ks[0], ks[1], state_size, hidden_size)
    w2, b2 = linear(ks[2], ks[3], hidden_size, hidden_size)
    w3, b3 = linear(ks[4], ks[5], hidden_size, action_size)
    g1 = jnp.ones((1, hidden_size), jnp.float32)
    be1 = jnp.zeros((1, hidden_size), jnp.float32)
    g2 = jnp.ones((1, hidden_size), jnp.float32)
    be2 = jnp.zeros((1, hidden_size), jnp.float32)
    return (w1, b1, g1, be1, w2, b2, g2, be2, w3, b3)


def _ln_ref(h, gamma, beta, eps=1e-5):
    mu = jnp.mean(h, axis=-1, keepdims=True)
    var = jnp.mean((h - mu) * (h - mu), axis=-1, keepdims=True)
    return (h - mu) * jax.lax.rsqrt(var + eps) * gamma + beta


def reference_forward(x, params, normalize=True):
    (w1, b1, g1, be1, w2, b2, g2, be2, w3, b3) = params
    h = jnp.maximum(_ln_ref(x @ w1 + b1, g1, be1), 0.0)
    h = jnp.maximum(_ln_ref(h @ w2 + b2, g2, be2), 0.0)
    y = h @ w3 + b3
    return jnp.tanh(y) if normalize else y


if __name__ == "__main__":
    batch, state_size, hidden_size, action_size = 8, 16, 32, 8

    key = jax.random.PRNGKey(0)
    k_x, k_p = jax.random.split(key)
    x = jax.random.normal(k_x, (batch, state_size), jnp.float32)
    params = init_params(k_p, state_size, hidden_size, action_size)

    ref = reference_forward(x, params, normalize=True)

    # Prepare (pad + cast) the params ONCE per precision and reuse across calls.
    prep_f32 = prepare_params(params, use_bf16=False)
    prep_bf16 = prepare_params(params, use_bf16=True)

    # Exact-precision path (f32 MXU operands): tight check vs f32 reference.
    out_f32 = jax.block_until_ready(actor_forward(x, prep_f32, normalize=True))
    assert out_f32.shape == (batch, action_size)
    assert jnp.allclose(out_f32, ref, atol=5e-5, rtol=1e-5), "f32 path mismatch"

    # Fast path (bf16 MXU operands, f32 accumulate + f32 elementwise): loose check.
    out_bf16 = jax.block_until_ready(actor_forward(x, prep_bf16, normalize=True))
    assert out_bf16.shape == (batch, action_size)
    assert jnp.allclose(out_bf16, ref, atol=3e-2), "bf16 path mismatch"

    # normalize=False branch.
    out_raw = jax.block_until_ready(actor_forward(x, prep_f32, normalize=False))
    ref_raw = reference_forward(x, params, normalize=False)
    assert jnp.allclose(out_raw, ref_raw, atol=5e-5, rtol=1e-5), \
        "normalize=False mismatch"

    # Awkward batch size: exercises the fixed (sublane-only) batch padding path.
    x_odd = jax.random.normal(jax.random.PRNGKey(1), (5, state_size), jnp.float32)
    out_odd = jax.block_until_ready(actor_forward(x_odd, prep_f32, normalize=True))
    assert out_odd.shape == (5, action_size)
    assert jnp.allclose(out_odd, reference_forward(x_odd, params, True),
                        atol=5e-5, rtol=1e-5), "odd-batch mismatch"

    print("KERNEL_OK")
</pallas_src>

<mosaic_0001>
module attributes {stable_mosaic.version = 11 : i64} {
  func.func @actor_kernel(%arg0: i32, %arg1: memref<16x128xf32, #tpu.memory_space<vmem>>, %arg2: memref<128x128xf32, #tpu.memory_space<vmem>>, %arg3: memref<1x128xf32, #tpu.memory_space<vmem>>, %arg4: memref<1x128xf32, #tpu.memory_space<vmem>>, %arg5: memref<1x128xf32, #tpu.memory_space<vmem>>, %arg6: memref<128x128xf32, #tpu.memory_space<vmem>>, %arg7: memref<1x128xf32, #tpu.memory_space<vmem>>, %arg8: memref<1x128xf32, #tpu.memory_space<vmem>>, %arg9: memref<1x128xf32, #tpu.memory_space<vmem>>, %arg10: memref<128x128xf32, #tpu.memory_space<vmem>>, %arg11: memref<1x128xf32, #tpu.memory_space<vmem>>, %arg12: memref<16x128xf32, #tpu.memory_space<vmem>>) attributes {dimension_semantics = [#tpu.dimension_semantics<parallel>], iteration_bounds = array<i64: 1>, scalar_prefetch = 0 : i64, scratch_operands = 0 : i64, tpu.core_type = #tpu.core_type<tc>, window_params = [{transform_indices = @transform_0, window_bounds = array<i64: 16, 128>}, {pipeline_mode = #tpu.pipeline_mode<synchronous>, transform_indices = @transform_1, window_bounds = array<i64: 128, 128>}, {pipeline_mode = #tpu.pipeline_mode<synchronous>, transform_indices = @transform_2, window_bounds = array<i64: 1, 128>}, {pipeline_mode = #tpu.pipeline_mode<synchronous>, transform_indices = @transform_3, window_bounds = array<i64: 1, 128>}, {pipeline_mode = #tpu.pipeline_mode<synchronous>, transform_indices = @transform_4, window_bounds = array<i64: 1, 128>}, {pipeline_mode = #tpu.pipeline_mode<synchronous>, transform_indices = @transform_5, window_bounds = array<i64: 128, 128>}, {pipeline_mode = #tpu.pipeline_mode<synchronous>, transform_indices = @transform_6, window_bounds = array<i64: 1, 128>}, {pipeline_mode = #tpu.pipeline_mode<synchronous>, transform_indices = @transform_7, window_bounds = array<i64: 1, 128>}, {pipeline_mode = #tpu.pipeline_mode<synchronous>, transform_indices = @transform_8, window_bounds = array<i64: 1, 128>}, {pipeline_mode = #tpu.pipeline_mode<synchronous>, transform_indices = @transform_9, window_bounds = array<i64: 128, 128>}, {pipeline_mode = #tpu.pipeline_mode<synchronous>, transform_indices = @transform_10, window_bounds = array<i64: 1, 128>}, {transform_indices = @transform_11, window_bounds = array<i64: 16, 128>}]} {
    %c0 = arith.constant 0 : index
    %c0_0 = arith.constant 0 : index
    %0 = vector.load %arg1[%c0, %c0_0] : memref<16x128xf32, #tpu.memory_space<vmem>>, vector<16x128xf32>
    %c0_1 = arith.constant 0 : index
    %c0_2 = arith.constant 0 : index
    %1 = vector.load %arg2[%c0_1, %c0_2] : memref<128x128xf32, #tpu.memory_space<vmem>>, vector<128x128xf32>
    %cst = arith.constant dense<0.000000e+00> : vector<16x128xf32>
    %2 = tpu.matmul %0, %1, %cst {dimension_numbers = #tpu.dot_dimension_numbers<[1], [0], [0], [1], [0, 0, 1, 1], [], []>} : vector<16x128xf32>, vector<128x128xf32>, vector<16x128xf32> -> vector<16x128xf32>
    %c0_3 = arith.constant 0 : index
    %c0_4 = arith.constant 0 : index
    %3 = vector.load %arg3[%c0_3, %c0_4] : memref<1x128xf32, #tpu.memory_space<vmem>>, vector<1x128xf32>
    %4 = vector.broadcast %3 : vector<1x128xf32> to vector<16x128xf32>
    %5 = arith.addf %2, %4 : vector<16x128xf32>
    %c0_5 = arith.constant 0 : index
    %c0_6 = arith.constant 0 : index
    %6 = vector.load %arg4[%c0_5, %c0_6] : memref<1x128xf32, #tpu.memory_space<vmem>>, vector<1x128xf32>
    %c0_7 = arith.constant 0 : index
    %c0_8 = arith.constant 0 : index
    %7 = vector.load %arg5[%c0_7, %c0_8] : memref<1x128xf32, #tpu.memory_space<vmem>>, vector<1x128xf32>
    %cst_9 = arith.constant dense<0.000000e+00> : vector<16xf32>
    %8 = vector.multi_reduction <add>, %5, %cst_9 [1] : vector<16x128xf32> to vector<16xf32>
    %9 = vector.shape_cast %8 : vector<16xf32> to vector<16x1xf32>
    %10 = arith.mulf %5, %5 : vector<16x128xf32>
    %cst_10 = arith.constant dense<0.000000e+00> : vector<16xf32>
    %11 = vector.multi_reduction <add>, %10, %cst_10 [1] : vector<16x128xf32> to vector<16xf32>
    %12 = vector.shape_cast %11 : vector<16xf32> to vector<16x1xf32>
    %cst_11 = arith.constant 3.125000e-02 : f32
    %13 = vector.broadcast %cst_11 : f32 to vector<16x1xf32>
    %14 = arith.mulf %9, %13 : vector<16x1xf32>
    %cst_12 = arith.constant 3.125000e-02 : f32
    %15 = vector.broadcast %cst_12 : f32 to vector<16x1xf32>
    %16 = arith.mulf %12, %15 : vector<16x1xf32>
    %17 = arith.mulf %14, %14 : vector<16x1xf32>
    %18 = arith.subf %16, %17 : vector<16x1xf32>
    %cst_13 = arith.constant 0.000000e+00 : f32
    %19 = vector.broadcast %cst_13 : f32 to vector<16x1xf32>
    %20 = arith.maximumf %18, %19 : vector<16x1xf32>
    %21 = vector.broadcast %14 : vector<16x1xf32> to vector<16x128xf32>
    %22 = arith.subf %5, %21 : vector<16x128xf32>
    %cst_14 = arith.constant 9.99999974E-6 : f32
    %23 = vector.broadcast %cst_14 : f32 to vector<16x1xf32>
    %24 = arith.addf %20, %23 : vector<16x1xf32>
    %25 = math.rsqrt %24 : vector<16x1xf32>
    %26 = vector.broadcast %25 : vector<16x1xf32> to vector<16x128xf32>
    %27 = arith.mulf %22, %26 : vector<16x128xf32>
    %28 = vector.broadcast %6 : vector<1x128xf32> to vector<16x128xf32>
    %29 = arith.mulf %27, %28 : vector<16x128xf32>
    %30 = vector.broadcast %7 : vector<1x128xf32> to vector<16x128xf32>
    %31 = arith.addf %29, %30 : vector<16x128xf32>
    %cst_15 = arith.constant 0.000000e+00 : f32
    %32 = vector.broadcast %cst_15 : f32 to vector<16x128xf32>
    %33 = arith.maximumf %31, %32 : vector<16x128xf32>
    %c0_16 = arith.constant 0 : index
    %c0_17 = arith.constant 0 : index
    %34 = vector.load %arg6[%c0_16, %c0_17] : memref<128x128xf32, #tpu.memory_space<vmem>>, vector<128x128xf32>
    %cst_18 = arith.constant dense<0.000000e+00> : vector<16x128xf32>
    %35 = tpu.matmul %33, %34, %cst_18 {dimension_numbers = #tpu.dot_dimension_numbers<[1], [0], [0], [1], [0, 0, 1, 1], [], []>} : vector<16x128xf32>, vector<128x128xf32>, vector<16x128xf32> -> vector<16x128xf32>
    %c0_19 = arith.constant 0 : index
    %c0_20 = arith.constant 0 : index
    %36 = vector.load %arg7[%c0_19, %c0_20] : memref<1x128xf32, #tpu.memory_space<vmem>>, vector<1x128xf32>
    %37 = vector.broadcast %36 : vector<1x128xf32> to vector<16x128xf32>
    %38 = arith.addf %35, %37 : vector<16x128xf32>
    %c0_21 = arith.constant 0 : index
    %c0_22 = arith.constant 0 : index
    %39 = vector.load %arg8[%c0_21, %c0_22] : memref<1x128xf32, #tpu.memory_space<vmem>>, vector<1x128xf32>
    %c0_23 = arith.constant 0 : index
    %c0_24 = arith.constant 0 : index
    %40 = vector.load %arg9[%c0_23, %c0_24] : memref<1x128xf32, #tpu.memory_space<vmem>>, vector<1x128xf32>
    %cst_25 = arith.constant dense<0.000000e+00> : vector<16xf32>
    %41 = vector.multi_reduction <add>, %38, %cst_25 [1] : vector<16x128xf32> to vector<16xf32>
    %42 = vector.shape_cast %41 : vector<16xf32> to vector<16x1xf32>
    %43 = arith.mulf %38, %38 : vector<16x128xf32>
    %cst_26 = arith.constant dense<0.000000e+00> : vector<16xf32>
    %44 = vector.multi_reduction <add>, %43, %cst_26 [1] : vector<16x128xf32> to vector<16xf32>
    %45 = vector.shape_cast %44 : vector<16xf32> to vector<16x1xf32>
    %cst_27 = arith.constant 3.125000e-02 : f32
    %46 = vector.broadcast %cst_27 : f32 to vector<16x1xf32>
    %47 = arith.mulf %42, %46 : vector<16x1xf32>
    %cst_28 = arith.constant 3.125000e-02 : f32
    %48 = vector.broadcast %cst_28 : f32 to vector<16x1xf32>
    %49 = arith.mulf %45, %48 : vector<16x1xf32>
    %50 = arith.mulf %47, %47 : vector<16x1xf32>
    %51 = arith.subf %49, %50 : vector<16x1xf32>
    %cst_29 = arith.constant 0.000000e+00 : f32
    %52 = vector.broadcast %cst_29 : f32 to vector<16x1xf32>
    %53 = arith.maximumf %51, %52 : vector<16x1xf32>
    %54 = vector.broadcast %47 : vector<16x1xf32> to vector<16x128xf32>
    %55 = arith.subf %38, %54 : vector<16x128xf32>
    %cst_30 = arith.constant 9.99999974E-6 : f32
    %56 = vector.broadcast %cst_30 : f32 to vector<16x1xf32>
    %57 = arith.addf %53, %56 : vector<16x1xf32>
    %58 = math.rsqrt %57 : vector<16x1xf32>
    %59 = vector.broadcast %58 : vector<16x1xf32> to vector<16x128xf32>
    %60 = arith.mulf %55, %59 : vector<16x128xf32>
    %61 = vector.broadcast %39 : vector<1x128xf32> to vector<16x128xf32>
    %62 = arith.mulf %60, %61 : vector<16x128xf32>
    %63 = vector.broadcast %40 : vector<1x128xf32> to vector<16x128xf32>
    %64 = arith.addf %62, %63 : vector<16x128xf32>
    %cst_31 = arith.constant 0.000000e+00 : f32
    %65 = vector.broadcast %cst_31 : f32 to vector<16x128xf32>
    %66 = arith.maximumf %64, %65 : vector<16x128xf32>
    %c0_32 = arith.constant 0 : index
    %c0_33 = arith.constant 0 : index
    %67 = vector.load %arg10[%c0_32, %c0_33] : memref<128x128xf32, #tpu.memory_space<vmem>>, vector<128x128xf32>
    %cst_34 = arith.constant dense<0.000000e+00> : vector<16x128xf32>
    %68 = tpu.matmul %66, %67, %cst_34 {dimension_numbers = #tpu.dot_dimension_numbers<[1], [0], [0], [1], [0, 0, 1, 1], [], []>} : vector<16x128xf32>, vector<128x128xf32>, vector<16x128xf32> -> vector<16x128xf32>
    %c0_35 = arith.constant 0 : index
    %c0_36 = arith.constant 0 : index
    %69 = vector.load %arg11[%c0_35, %c0_36] : memref<1x128xf32, #tpu.memory_space<vmem>>, vector<1x128xf32>
    %70 = vector.broadcast %69 : vector<1x128xf32> to vector<16x128xf32>
    %71 = arith.addf %68, %70 : vector<16x128xf32>
    %72 = math.tanh %71 : vector<16x128xf32>
    %c0_37 = arith.constant 0 : index
    %c0_38 = arith.constant 0 : index
    %73 = vector.load %arg12[%c0_37, %c0_38] : memref<16x128xf32, #tpu.memory_space<vmem>>, vector<16x128xf32>
    tpu.vector_store %arg12[%c0_37, %c0_38], %72 {strides = array<i32>} : memref<16x128xf32, #tpu.memory_space<vmem>>, vector<16x128xf32>,
    return
  }
  func.func @transform_0(%arg0: i32) -> (i32, i32) {
    %c0_i32 = arith.constant 0 : i32
    %c0_i32_0 = arith.constant 0 : i32
    return %arg0, %c0_i32 : i32, i32
  }
  func.func @transform_1(%arg0: i32) -> (i32, i32) {
    %c0_i32 = arith.constant 0 : i32
    %c0_i32_0 = arith.constant 0 : i32
    %c0_i32_1 = arith.constant 0 : i32
    return %c0_i32, %c0_i32_0 : i32, i32
  }
  func.func @transform_2(%arg0: i32) -> (i32, i32) {
    %c0_i32 = arith.constant 0 : i32
    %c0_i32_0 = arith.constant 0 : i32
    %c0_i32_1 = arith.constant 0 : i32
    return %c0_i32, %c0_i32_0 : i32, i32
  }
  func.func @transform_3(%arg0: i32) -> (i32, i32) {
    %c0_i32 = arith.constant 0 : i32
    %c0_i32_0 = arith.constant 0 : i32
    %c0_i32_1 = arith.constant 0 : i32
    return %c0_i32, %c0_i32_0 : i32, i32
  }
  func.func @transform_4(%arg0: i32) -> (i32, i32) {
    %c0_i32 = arith.constant 0 : i32
    %c0_i32_0 = arith.constant 0 : i32
    %c0_i32_1 = arith.constant 0 : i32
    return %c0_i32, %c0_i32_0 : i32, i32
  }
  func.func @transform_5(%arg0: i32) -> (i32, i32) {
    %c0_i32 = arith.constant 0 : i32
    %c0_i32_0 = arith.constant 0 : i32
    %c0_i32_1 = arith.constant 0 : i32
    return %c0_i32, %c0_i32_0 : i32, i32
  }
  func.func @transform_6(%arg0: i32) -> (i32, i32) {
    %c0_i32 = arith.constant 0 : i32
    %c0_i32_0 = arith.constant 0 : i32
    %c0_i32_1 = arith.constant 0 : i32
    return %c0_i32, %c0_i32_0 : i32, i32
  }
  func.func @transform_7(%arg0: i32) -> (i32, i32) {
    %c0_i32 = arith.constant 0 : i32
    %c0_i32_0 = arith.constant 0 : i32
    %c0_i32_1 = arith.constant 0 : i32
    return %c0_i32, %c0_i32_0 : i32, i32
  }
  func.func @transform_8(%arg0: i32) -> (i32, i32) {
    %c0_i32 = arith.constant 0 : i32
    %c0_i32_0 = arith.constant 0 : i32
    %c0_i32_1 = arith.constant 0 : i32
    return %c0_i32, %c0_i32_0 : i32, i32
  }
  func.func @transform_9(%arg0: i32) -> (i32, i32) {
    %c0_i32 = arith.constant 0 : i32
    %c0_i32_0 = arith.constant 0 : i32
    %c0_i32_1 = arith.constant 0 : i32
    return %c0_i32, %c0_i32_0 : i32, i32
  }
  func.func @transform_10(%arg0: i32) -> (i32, i32) {
    %c0_i32 = arith.constant 0 : i32
    %c0_i32_0 = arith.constant 0 : i32
    %c0_i32_1 = arith.constant 0 : i32
    return %c0_i32, %c0_i32_0 : i32, i32
  }
  func.func @transform_11(%arg0: i32) -> (i32, i32) {
    %c0_i32 = arith.constant 0 : i32
    %c0_i32_0 = arith.constant 0 : i32
    return %arg0, %c0_i32 : i32, i32
  }
}

module attributes {stable_mosaic.version = 11 : i64} {
  func.func @actor_kernel(%arg0: i32, %arg1: memref<16x128xf32, #tpu.memory_space<vmem>>, %arg2: memref<128x128xf32, #tpu.memory_space<vmem>>, %arg3: memref<1x128xf32, #tpu.memory_space<vmem>>, %arg4: memref<1x128xf32, #tpu.memory_space<vmem>>, %arg5: memref<1x128xf32, #tpu.memory_space<vmem>>, %arg6: memref<128x128xf32, #tpu.memory_space<vmem>>, %arg7: memref<1x128xf32, #tpu.memory_space<vmem>>, %arg8: memref<1x128xf32, #tpu.memory_space<vmem>>, %arg9: memref<1x128xf32, #tpu.memory_space<vmem>>, %arg10: memref<128x128xf32, #tpu.memory_space<vmem>>, %arg11: memref<1x128xf32, #tpu.memory_space<vmem>>, %arg12: memref<16x128xf32, #tpu.memory_space<vmem>>) attributes {dimension_semantics = [#tpu.dimension_semantics<parallel>], iteration_bounds = array<i64: 1>, scalar_prefetch = 0 : i64, scratch_operands = 0 : i64, tpu.core_type = #tpu.core_type<tc>, window_params = [{transform_indices = @transform_0, window_bounds = array<i64: 16, 128>}, {pipeline_mode = #tpu.pipeline_mode<synchronous>, transform_indices = @transform_1, window_bounds = array<i64: 128, 128>}, {pipeline_mode = #tpu.pipeline_mode<synchronous>, transform_indices = @transform_2, window_bounds = array<i64: 1, 128>}, {pipeline_mode = #tpu.pipeline_mode<synchronous>, transform_indices = @transform_3, window_bounds = array<i64: 1, 128>}, {pipeline_mode = #tpu.pipeline_mode<synchronous>, transform_indices = @transform_4, window_bounds = array<i64: 1, 128>}, {pipeline_mode = #tpu.pipeline_mode<synchronous>, transform_indices = @transform_5, window_bounds = array<i64: 128, 128>}, {pipeline_mode = #tpu.pipeline_mode<synchronous>, transform_indices = @transform_6, window_bounds = array<i64: 1, 128>}, {pipeline_mode = #tpu.pipeline_mode<synchronous>, transform_indices = @transform_7, window_bounds = array<i64: 1, 128>}, {pipeline_mode = #tpu.pipeline_mode<synchronous>, transform_indices = @transform_8, window_bounds = array<i64: 1, 128>}, {pipeline_mode = #tpu.pipeline_mode<synchronous>, transform_indices = @transform_9, window_bounds = array<i64: 128, 128>}, {pipeline_mode = #tpu.pipeline_mode<synchronous>, transform_indices = @transform_10, window_bounds = array<i64: 1, 128>}, {transform_indices = @transform_11, window_bounds = array<i64: 16, 128>}]} {
    %c0 = arith.constant 0 : index
    %c0_0 = arith.constant 0 : index
    %0 = vector.load %arg1[%c0, %c0_0] : memref<16x128xf32, #tpu.memory_space<vmem>>, vector<16x128xf32>
    %c0_1 = arith.constant 0 : index
    %c0_2 = arith.constant 0 : index
    %1 = vector.load %arg2[%c0_1, %c0_2] : memref<128x128xf32, #tpu.memory_space<vmem>>, vector<128x128xf32>
    %cst = arith.constant dense<0.000000e+00> : vector<16x128xf32>
    %2 = tpu.matmul %0, %1, %cst {dimension_numbers = #tpu.dot_dimension_numbers<[1], [0], [0], [1], [0, 0, 1, 1], [], []>} : vector<16x128xf32>, vector<128x128xf32>, vector<16x128xf32> -> vector<16x128xf32>
    %c0_3 = arith.constant 0 : index
    %c0_4 = arith.constant 0 : index
    %3 = vector.load %arg3[%c0_3, %c0_4] : memref<1x128xf32, #tpu.memory_space<vmem>>, vector<1x128xf32>
    %4 = vector.broadcast %3 : vector<1x128xf32> to vector<16x128xf32>
    %5 = arith.addf %2, %4 : vector<16x128xf32>
    %c0_5 = arith.constant 0 : index
    %c0_6 = arith.constant 0 : index
    %6 = vector.load %arg4[%c0_5, %c0_6] : memref<1x128xf32, #tpu.memory_space<vmem>>, vector<1x128xf32>
    %c0_7 = arith.constant 0 : index
    %c0_8 = arith.constant 0 : index
    %7 = vector.load %arg5[%c0_7, %c0_8] : memref<1x128xf32, #tpu.memory_space<vmem>>, vector<1x128xf32>
    %cst_9 = arith.constant dense<0.000000e+00> : vector<16xf32>
    %8 = vector.multi_reduction <add>, %5, %cst_9 [1] : vector<16x128xf32> to vector<16xf32>
    %9 = vector.shape_cast %8 : vector<16xf32> to vector<16x1xf32>
    %10 = arith.mulf %5, %5 : vector<16x128xf32>
    %cst_10 = arith.constant dense<0.000000e+00> : vector<16xf32>
    %11 = vector.multi_reduction <add>, %10, %cst_10 [1] : vector<16x128xf32> to vector<16xf32>
    %12 = vector.shape_cast %11 : vector<16xf32> to vector<16x1xf32>
    %cst_11 = arith.constant 3.125000e-02 : f32
    %13 = vector.broadcast %cst_11 : f32 to vector<16x1xf32>
    %14 = arith.mulf %9, %13 : vector<16x1xf32>
    %cst_12 = arith.constant 3.125000e-02 : f32
    %15 = vector.broadcast %cst_12 : f32 to vector<16x1xf32>
    %16 = arith.mulf %12, %15 : vector<16x1xf32>
    %17 = arith.mulf %14, %14 : vector<16x1xf32>
    %18 = arith.subf %16, %17 : vector<16x1xf32>
    %cst_13 = arith.constant 0.000000e+00 : f32
    %19 = vector.broadcast %cst_13 : f32 to vector<16x1xf32>
    %20 = arith.maximumf %18, %19 : vector<16x1xf32>
    %21 = vector.broadcast %14 : vector<16x1xf32> to vector<16x128xf32>
    %22 = arith.subf %5, %21 : vector<16x128xf32>
    %cst_14 = arith.constant 9.99999974E-6 : f32
    %23 = vector.broadcast %cst_14 : f32 to vector<16x1xf32>
    %24 = arith.addf %20, %23 : vector<16x1xf32>
    %25 = math.rsqrt %24 : vector<16x1xf32>
    %26 = vector.broadcast %25 : vector<16x1xf32> to vector<16x128xf32>
    %27 = arith.mulf %22, %26 : vector<16x128xf32>
    %28 = vector.broadcast %6 : vector<1x128xf32> to vector<16x128xf32>
    %29 = arith.mulf %27, %28 : vector<16x128xf32>
    %30 = vector.broadcast %7 : vector<1x128xf32> to vector<16x128xf32>
    %31 = arith.addf %29, %30 : vector<16x128xf32>
    %cst_15 = arith.constant 0.000000e+00 : f32
    %32 = vector.broadcast %cst_15 : f32 to vector<16x128xf32>
    %33 = arith.maximumf %31, %32 : vector<16x128xf32>
    %c0_16 = arith.constant 0 : index
    %c0_17 = arith.constant 0 : index
    %34 = vector.load %arg6[%c0_16, %c0_17] : memref<128x128xf32, #tpu.memory_space<vmem>>, vector<128x128xf32>
    %cst_18 = arith.constant dense<0.000000e+00> : vector<16x128xf32>
    %35 = tpu.matmul %33, %34, %cst_18 {dimension_numbers = #tpu.dot_dimension_numbers<[1], [0], [0], [1], [0, 0, 1, 1], [], []>} : vector<16x128xf32>, vector<128x128xf32>, vector<16x128xf32> -> vector<16x128xf32>
    %c0_19 = arith.constant 0 : index
    %c0_20 = arith.constant 0 : index
    %36 = vector.load %arg7[%c0_19, %c0_20] : memref<1x128xf32, #tpu.memory_space<vmem>>, vector<1x128xf32>
    %37 = vector.broadcast %36 : vector<1x128xf32> to vector<16x128xf32>
    %38 = arith.addf %35, %37 : vector<16x128xf32>
    %c0_21 = arith.constant 0 : index
    %c0_22 = arith.constant 0 : index
    %39 = vector.load %arg8[%c0_21, %c0_22] : memref<1x128xf32, #tpu.memory_space<vmem>>, vector<1x128xf32>
    %c0_23 = arith.constant 0 : index
    %c0_24 = arith.constant 0 : index
    %40 = vector.load %arg9[%c0_23, %c0_24] : memref<1x128xf32, #tpu.memory_space<vmem>>, vector<1x128xf32>
    %cst_25 = arith.constant dense<0.000000e+00> : vector<16xf32>
    %41 = vector.multi_reduction <add>, %38, %cst_25 [1] : vector<16x128xf32> to vector<16xf32>
    %42 = vector.shape_cast %41 : vector<16xf32> to vector<16x1xf32>
    %43 = arith.mulf %38, %38 : vector<16x128xf32>
    %cst_26 = arith.constant dense<0.000000e+00> : vector<16xf32>
    %44 = vector.multi_reduction <add>, %43, %cst_26 [1] : vector<16x128xf32> to vector<16xf32>
    %45 = vector.shape_cast %44 : vector<16xf32> to vector<16x1xf32>
    %cst_27 = arith.constant 3.125000e-02 : f32
    %46 = vector.broadcast %cst_27 : f32 to vector<16x1xf32>
    %47 = arith.mulf %42, %46 : vector<16x1xf32>
    %cst_28 = arith.constant 3.125000e-02 : f32
    %48 = vector.broadcast %cst_28 : f32 to vector<16x1xf32>
    %49 = arith.mulf %45, %48 : vector<16x1xf32>
    %50 = arith.mulf %47, %47 : vector<16x1xf32>
    %51 = arith.subf %49, %50 : vector<16x1xf32>
    %cst_29 = arith.constant 0.000000e+00 : f32
    %52 = vector.broadcast %cst_29 : f32 to vector<16x1xf32>
    %53 = arith.maximumf %51, %52 : vector<16x1xf32>
    %54 = vector.broadcast %47 : vector<16x1xf32> to vector<16x128xf32>
    %55 = arith.subf %38, %54 : vector<16x128xf32>
    %cst_30 = arith.constant 9.99999974E-6 : f32
    %56 = vector.broadcast %cst_30 : f32 to vector<16x1xf32>
    %57 = arith.addf %53, %56 : vector<16x1xf32>
    %58 = math.rsqrt %57 : vector<16x1xf32>
    %59 = vector.broadcast %58 : vector<16x1xf32> to vector<16x128xf32>
    %60 = arith.mulf %55, %59 : vector<16x128xf32>
    %61 = vector.broadcast %39 : vector<1x128xf32> to vector<16x128xf32>
    %62 = arith.mulf %60, %61 : vector<16x128xf32>
    %63 = vector.broadcast %40 : vector<1x128xf32> to vector<16x128xf32>
    %64 = arith.addf %62, %63 : vector<16x128xf32>
    %cst_31 = arith.constant 0.000000e+00 : f32
    %65 = vector.broadcast %cst_31 : f32 to vector<16x128xf32>
    %66 = arith.maximumf %64, %65 : vector<16x128xf32>
    %c0_32 = arith.constant 0 : index
    %c0_33 = arith.constant 0 : index
    %67 = vector.load %arg10[%c0_32, %c0_33] : memref<128x128xf32, #tpu.memory_space<vmem>>, vector<128x128xf32>
    %cst_34 = arith.constant dense<0.000000e+00> : vector<16x128xf32>
    %68 = tpu.matmul %66, %67, %cst_34 {dimension_numbers = #tpu.dot_dimension_numbers<[1], [0], [0], [1], [0, 0, 1, 1], [], []>} : vector<16x128xf32>, vector<128x128xf32>, vector<16x128xf32> -> vector<16x128xf32>
    %c0_35 = arith.constant 0 : index
    %c0_36 = arith.constant 0 : index
    %69 = vector.load %arg11[%c0_35, %c0_36] : memref<1x128xf32, #tpu.memory_space<vmem>>, vector<1x128xf32>
    %70 = vector.broadcast %69 : vector<1x128xf32> to vector<16x128xf32>
    %71 = arith.addf %68, %70 : vector<16x128xf32>
    %72 = math.tanh %71 : vector<16x128xf32>
    %c0_37 = arith.constant 0 : index
    %c0_38 = arith.constant 0 : index
    %73 = vector.load %arg12[%c0_37, %c0_38] : memref<16x128xf32, #tpu.memory_space<vmem>>, vector<16x128xf32>
    tpu.vector_store %arg12[%c0_37, %c0_38], %72 {strides = array<i32>} : memref<16x128xf32, #tpu.memory_space<vmem>>, vector<16x128xf32>,
    return
  }
  func.func @transform_0(%arg0: i32) -> (i32, i32) {
    %c0_i32 = arith.constant 0 : i32
    %c0_i32_0 = arith.constant 0 : i32
    return %arg0, %c0_i32 : i32, i32
  }
  func.func @transform_1(%arg0: i32) -> (i32, i32) {
    %c0_i32 = arith.constant 0 : i32
    %c0_i32_0 = arith.constant 0 : i32
    %c0_i32_1 = arith.constant 0 : i32
    return %c0_i32, %c0_i32_0 : i32, i32
  }
  func.func @transform_2(%arg0: i32) -> (i32, i32) {
    %c0_i32 = arith.constant 0 : i32
    %c0_i32_0 = arith.constant 0 : i32
    %c0_i32_1 = arith.constant 0 : i32
    return %c0_i32, %c0_i32_0 : i32, i32
  }
  func.func @transform_3(%arg0: i32) -> (i32, i32) {
    %c0_i32 = arith.constant 0 : i32
    %c0_i32_0 = arith.constant 0 : i32
    %c0_i32_1 = arith.constant 0 : i32
    return %c0_i32, %c0_i32_0 : i32, i32
  }
  func.func @transform_4(%arg0: i32) -> (i32, i32) {
    %c0_i32 = arith.constant 0 : i32
    %c0_i32_0 = arith.constant 0 : i32
    %c0_i32_1 = arith.constant 0 : i32
    return %c0_i32, %c0_i32_0 : i32, i32
  }
  func.func @transform_5(%arg0: i32) -> (i32, i32) {
    %c0_i32 = arith.constant 0 : i32
    %c0_i32_0 = arith.constant 0 : i32
    %c0_i32_1 = arith.constant 0 : i32
    return %c0_i32, %c0_i32_0 : i32, i32
  }
  func.func @transform_6(%arg0: i32) -> (i32, i32) {
    %c0_i32 = arith.constant 0 : i32
    %c0_i32_0 = arith.constant 0 : i32
    %c0_i32_1 = arith.constant 0 : i32
    return %c0_i32, %c0_i32_0 : i32, i32
  }
  func.func @transform_7(%arg0: i32) -> (i32, i32) {
    %c0_i32 = arith.constant 0 : i32
    %c0_i32_0 = arith.constant 0 : i32
    %c0_i32_1 = arith.constant 0 : i32
    return %c0_i32, %c0_i32_0 : i32, i32
  }
  func.func @transform_8(%arg0: i32) -> (i32, i32) {
    %c0_i32 = arith.constant 0 : i32
    %c0_i32_0 = arith.constant 0 : i32
    %c0_i32_1 = arith.constant 0 : i32
    return %c0_i32, %c0_i32_0 : i32, i32
  }
  func.func @transform_9(%arg0: i32) -> (i32, i32) {
    %c0_i32 = arith.constant 0 : i32
    %c0_i32_0 = arith.constant 0 : i32
    %c0_i32_1 = arith.constant 0 : i32
    return %c0_i32, %c0_i32_0 : i32, i32
  }
  func.func @transform_10(%arg0: i32) -> (i32, i32) {
    %c0_i32 = arith.constant 0 : i32
    %c0_i32_0 = arith.constant 0 : i32
    %c0_i32_1 = arith.constant 0 : i32
    return %c0_i32, %c0_i32_0 : i32, i32
  }
  func.func @transform_11(%arg0: i32) -> (i32, i32) {
    %c0_i32 = arith.constant 0 : i32
    %c0_i32_0 = arith.constant 0 : i32
    return %arg0, %c0_i32 : i32, i32
  }
}

</mosaic_0001>

<llo_original>
// kernel: tpu_custom_call.1
$region0: #{tpu_custom_call.1}
  #allocation0 [shape = 'u32[]', space=smem, size = 0x4, offset = 0x4, fixed_abs, tag = 'smem constant byte address 0x4 - core index']
  #allocation1 [shape = 'u32[144,128]{1,0:T(1,128)}', space=vmem, size = 0x12000, scoped, tag = 'internal scratch']
  %s0 = inlined_call_operand.hbm [shape: f32[16,128], index: 0, kind: input, shape index: {}]
  %s1 = inlined_call_operand.hbm [shape: f32[128,128], index: 1, kind: input, shape index: {}]
  %s2 = inlined_call_operand.vmem [shape: f32[1,128], index: 2, kind: input, shape index: {}]
  %s3 = inlined_call_operand.vmem [shape: f32[1,128], index: 3, kind: input, shape index: {}]
  %s4 = inlined_call_operand.vmem [shape: f32[1,128], index: 4, kind: input, shape index: {}]
  %s5 = inlined_call_operand.hbm [shape: f32[128,128], index: 5, kind: input, shape index: {}]
  %s6 = inlined_call_operand.vmem [shape: f32[1,128], index: 6, kind: input, shape index: {}]
  %s7 = inlined_call_operand.vmem [shape: f32[1,128], index: 7, kind: input, shape index: {}]
  %s8 = inlined_call_operand.vmem [shape: f32[1,128], index: 8, kind: input, shape index: {}]
  %s9 = inlined_call_operand.hbm [shape: f32[128,128], index: 9, kind: input, shape index: {}]
  %s10 = inlined_call_operand.vmem [shape: f32[1,128], index: 10, kind: input, shape index: {}]
  %s11 = inlined_call_operand.hbm [shape: f32[16,128], index: 11, kind: output, shape index: {}]
  %s12 = sld [smem:[#allocation0]]
  $region70: #{tpu_custom_call.1} parent=0
    _
  %s14 = ssub.s32 1, %s12
  %s15 = scalar_select 0, %s14, %s12
  $region1: #{tpu_custom_call.1} parent=0
    #allocation2 [shape = 'u8[8192]{0}', space=vmem, size = 0x2000, scoped, tag = 'input window, operand 0, single buffered']
    #allocation3 [shape = 's32[1]{0}', space=sflag, size = 0x4, scoped, tag = 'scoped memory for tpu_custom_call.1']
    #allocation4 [shape = 's32[1]{0}', space=sflag, size = 0x4, scoped, tag = 'scoped memory for tpu_custom_call.1']
    #allocation5 [shape = 'u8[65536]{0}', space=vmem, size = 0x10000, scoped, tag = 'input window, operand 1, single buffered']
    #allocation6 [shape = 's32[1]{0}', space=sflag, size = 0x4, scoped, tag = 'scoped memory for tpu_custom_call.1']
    #allocation7 [shape = 'u8[65536]{0}', space=vmem, size = 0x10000, scoped, tag = 'input window, operand 5, single buffered']
    #allocation8 [shape = 'u8[65536]{0}', space=vmem, size = 0x10000, scoped, tag = 'input window, operand 9, single buffered']
    #allocation9 [shape = 's32[1]{0}', space=sflag, size = 0x4, scoped, tag = 'scoped memory for tpu_custom_call.1']
    #allocation10 [shape = 'u8[8192]{0}', space=vmem, size = 0x2000, scoped, tag = 'output window, operand 0, single buffered']
    %16 = vsyncpa [#allocation3], 0
    %17 = vsyncpa [#allocation6], 0
    %18 = vsyncpa [#allocation9], 0
    %19 = vsyncpa [#allocation4], 0
    // Predicated region
    $region2: #{tpu_custom_call.1} parent=1 // pred_check
      _
    $region3: #{tpu_custom_call.1} parent=1 // pred_check_branch
      %21 = sbr.rel (0) target = $region5
    $region4: #{tpu_custom_call.1} parent=1 // pred_region
      %s23 = ssub.s32 256, 256
      %24 = vsyncadd [#allocation3], %s23
      %s25 = sshll.u32 [#allocation2], 4
      %s26 = int_to_ptr.vmem [resolvable:$true] %s25
      %31 = dma.hbm_to_vmem [thread:$0]  %s0, 256, %s26, [#allocation3], 128, 128, 8
    $region5: #{tpu_custom_call.1} parent=1 // pred_fallthru
      _
    // Predicated region
    $region6: #{tpu_custom_call.1} parent=1 // pred_check
      _
    $region7: #{tpu_custom_call.1} parent=1 // pred_check_branch
      %33 = sbr.rel (0) target = $region9
    $region8: #{tpu_custom_call.1} parent=1 // pred_region
      %s35 = ssub.s32 2048, 2048
      %36 = vsyncadd [#allocation6], %s35
      %s37 = sshll.u32 [#allocation5], 4
      %s38 = int_to_ptr.vmem [resolvable:$true] %s37
      %43 = dma.hbm_to_vmem [thread:$0]  %s1, 2048, %s38, [#allocation6], 128, 128, 8
    $region9: #{tpu_custom_call.1} parent=1 // pred_fallthru
      _
    // Predicated region
    $region10: #{tpu_custom_call.1} parent=1 // pred_check
      _
    $region11: #{tpu_custom_call.1} parent=1 // pred_check_branch
      %45 = sbr.rel (0) target = $region13
    $region12: #{tpu_custom_call.1} parent=1 // pred_region
      _
    $region13: #{tpu_custom_call.1} parent=1 // pred_fallthru
      _
    // Predicated region
    $region14: #{tpu_custom_call.1} parent=1 // pred_check
      _
    $region15: #{tpu_custom_call.1} parent=1 // pred_check_branch
      %47 = sbr.rel (0) target = $region17
    $region16: #{tpu_custom_call.1} parent=1 // pred_region
      _
    $region17: #{tpu_custom_call.1} parent=1 // pred_fallthru
      _
    // Predicated region
    $region18: #{tpu_custom_call.1} parent=1 // pred_check
      _
    $region19: #{tpu_custom_call.1} parent=1 // pred_check_branch
      %49 = sbr.rel (0) target = $region21
    $region20: #{tpu_custom_call.1} parent=1 // pred_region
      _
    $region21: #{tpu_custom_call.1} parent=1 // pred_fallthru
      _
    // Predicated region
    $region22: #{tpu_custom_call.1} parent=1 // pred_check
      _
    $region23: #{tpu_custom_call.1} parent=1 // pred_check_branch
      %51 = sbr.rel (0) target = $region25
    $region24: #{tpu_custom_call.1} parent=1 // pred_region
      %s53 = ssub.s32 2048, 2048
      %54 = vsyncadd [#allocation6], %s53
      %s55 = sshll.u32 [#allocation7], 4
      %s56 = int_to_ptr.vmem [resolvable:$true] %s55
      %61 = dma.hbm_to_vmem [thread:$0]  %s5, 2048, %s56, [#allocation6], 128, 128, 8
    $region25: #{tpu_custom_call.1} parent=1 // pred_fallthru
      _
    // Predicated region
    $region26: #{tpu_custom_call.1} parent=1 // pred_check
      _
    $region27: #{tpu_custom_call.1} parent=1 // pred_check_branch
      %63 = sbr.rel (0) target = $region29
    $region28: #{tpu_custom_call.1} parent=1 // pred_region
      _
    $region29: #{tpu_custom_call.1} parent=1 // pred_fallthru
      _
    // Predicated region
    $region30: #{tpu_custom_call.1} parent=1 // pred_check
      _
    $region31: #{tpu_custom_call.1} parent=1 // pred_check_branch
      %65 = sbr.rel (0) target = $region33
    $region32: #{tpu_custom_call.1} parent=1 // pred_region
      _
    $region33: #{tpu_custom_call.1} parent=1 // pred_fallthru
      _
    // Predicated region
    $region34: #{tpu_custom_call.1} parent=1 // pred_check
      _
    $region35: #{tpu_custom_call.1} parent=1 // pred_check_branch
      %67 = sbr.rel (0) target = $region37
    $region36: #{tpu_custom_call.1} parent=1 // pred_region
      _
    $region37: #{tpu_custom_call.1} parent=1 // pred_fallthru
      _
    // Predicated region
    $region38: #{tpu_custom_call.1} parent=1 // pred_check
      _
    $region39: #{tpu_custom_call.1} parent=1 // pred_check_branch
      %69 = sbr.rel (0) target = $region41
    $region40: #{tpu_custom_call.1} parent=1 // pred_region
      %s71 = ssub.s32 2048, 2048
      %72 = vsyncadd [#allocation9], %s71
      %s73 = sshll.u32 [#allocation8], 4
      %s74 = int_to_ptr.vmem [resolvable:$true] %s73
      %79 = dma.hbm_to_vmem [thread:$0]  %s9, 2048, %s74, [#allocation9], 128, 128, 8
    $region41: #{tpu_custom_call.1} parent=1 // pred_fallthru
      _
    // Predicated region
    $region42: #{tpu_custom_call.1} parent=1 // pred_check
      _
    $region43: #{tpu_custom_call.1} parent=1 // pred_check_branch
      %81 = sbr.rel (0) target = $region45
    $region44: #{tpu_custom_call.1} parent=1 // pred_region
      _
    $region45: #{tpu_custom_call.1} parent=1 // pred_fallthru
      _
    // Predicated region
    $region46: #{tpu_custom_call.1} parent=1 // pred_check
      _
    $region47: #{tpu_custom_call.1} parent=1 // pred_check_branch
      %83 = sbr.rel (0) target = $region49
    $region48: #{tpu_custom_call.1} parent=1 // pred_region
      %84 = dma.done [#allocation3], 256
    $region49: #{tpu_custom_call.1} parent=1 // pred_fallthru
      _
    // Predicated region
    $region50: #{tpu_custom_call.1} parent=1 // pred_check
      _
    $region51: #{tpu_custom_call.1} parent=1 // pred_check_branch
      %86 = sbr.rel (0) target = $region53
    $region52: #{tpu_custom_call.1} parent=1 // pred_region
      %87 = dma.done [#allocation6], 2048
    $region53: #{tpu_custom_call.1} parent=1 // pred_fallthru
      _
    // Predicated region
    $region54: #{tpu_custom_call.1} parent=1 // pred_check
      _
    $region55: #{tpu_custom_call.1} parent=1 // pred_check_branch
      %89 = sbr.rel (0) target = $region57
    $region56: #{tpu_custom_call.1} parent=1 // pred_region
      %90 = dma.done [#allocation6], 2048
    $region57: #{tpu_custom_call.1} parent=1 // pred_fallthru
      _
    // Predicated region
    $region58: #{tpu_custom_call.1} parent=1 // pred_check
      _
    $region59: #{tpu_custom_call.1} parent=1 // pred_check_branch
      %92 = sbr.rel (0) target = $region61
    $region60: #{tpu_custom_call.1} parent=1 // pred_region
      %93 = dma.done [#allocation9], 2048
    $region61: #{tpu_custom_call.1} parent=1 // pred_fallthru
      _
    %v94 = vld [vmem:[#allocation2] sm:$0xff]
    %v95 = vld [vmem:[#allocation2 + $0x8] sm:$0xff]
    %v96 = vld [vmem:[#allocation5] sm:$0xff]
    %v97 = vld [vmem:[#allocation5 + $0x8] sm:$0xff]
    %v98 = vld [vmem:[#allocation5 + $0x10] sm:$0xff]
    %v99 = vld [vmem:[#allocation5 + $0x18] sm:$0xff]
    %v100 = vld [vmem:[#allocation5 + $0x20] sm:$0xff]
    %v101 = vld [vmem:[#allocation5 + $0x28] sm:$0xff]
    %v102 = vld [vmem:[#allocation5 + $0x30] sm:$0xff]
    %v103 = vld [vmem:[#allocation5 + $0x38] sm:$0xff]
    %v104 = vld [vmem:[#allocation5 + $0x40] sm:$0xff]
    %v105 = vld [vmem:[#allocation5 + $0x48] sm:$0xff]
    %v106 = vld [vmem:[#allocation5 + $0x50] sm:$0xff]
    %v107 = vld [vmem:[#allocation5 + $0x58] sm:$0xff]
    %v108 = vld [vmem:[#allocation5 + $0x60] sm:$0xff]
    %v109 = vld [vmem:[#allocation5 + $0x68] sm:$0xff]
    %v110 = vld [vmem:[#allocation5 + $0x70] sm:$0xff]
    %v111 = vld [vmem:[#allocation5 + $0x78] sm:$0xff]
    %v112 = vld [vmem:[%s2] sm:$0x1]
    %v114 = vlaneseq
    %v115 = vshrl.u32 %v114, 7
    %v116 = vsub.s32 0, %v115
    %v117 = vrot.slane %v112, %v116
    %119 = vmatprep.subr.mxu0 0.0
    %120 = vmatpush1.msra.mxu0 %v96
    %121 = vmatprep.subr.mxu0 0.0
    %122 = vmatpush1.msra.mxu0 %v97
    %123 = vmatprep.subr.mxu0 0.0
    %124 = vmatpush1.msra.mxu0 %v98
    %125 = vmatprep.subr.mxu0 0.0
    %126 = vmatpush1.msra.mxu0 %v99
    %127 = vmatprep.subr.mxu0 0.0
    %128 = vmatpush1.msra.mxu0 %v100
    %129 = vmatprep.subr.mxu0 0.0
    %130 = vmatpush1.msra.mxu0 %v101
    %131 = vmatprep.subr.mxu0 0.0
    %132 = vmatpush1.msra.mxu0 %v102
    %133 = vmatprep.subr.mxu0 0.0
    %134 = vmatpush1.msra.mxu0 %v103
    %135 = vmatprep.subr.mxu0 0.0
    %136 = vmatpush1.msra.mxu0 %v104
    %137 = vmatprep.subr.mxu0 0.0
    %138 = vmatpush1.msra.mxu0 %v105
    %139 = vmatprep.subr.mxu0 0.0
    %140 = vmatpush1.msra.mxu0 %v106
    %141 = vmatprep.subr.mxu0 0.0
    %142 = vmatpush1.msra.mxu0 %v107
    %143 = vmatprep.subr.mxu0 0.0
    %144 = vmatpush1.msra.mxu0 %v108
    %145 = vmatprep.subr.mxu0 0.0
    %146 = vmatpush1.msra.mxu0 %v109
    %147 = vmatprep.subr.mxu0 0.0
    %148 = vmatpush1.msra.mxu0 %v110
    %149 = vmatprep.subr.mxu0 0.0
    %150 = vmatpush1.msra.mxu0 %v111
    %151 = vmatprep.subr.mxu0 0.0
    %152 = vmatpush1.msra.mxu0 0.0
    %153 = vmatprep.subr.mxu0 0.0
    %154 = vmatpush1.msra.mxu0 0.0
    %155 = vmatprep.subr.mxu0 0.0
    %156 = vmatpush1.msra.mxu0 0.0
    %157 = vmatprep.subr.mxu0 0.0
    %158 = vmatpush1.msra.mxu0 0.0
    %159 = vmatprep.subr.mxu0 0.0
    %160 = vmatpush1.msra.mxu0 0.0
    %161 = vmatprep.subr.mxu0 0.0
    %162 = vmatpush1.msra.mxu0 0.0
    %163 = vmatprep.subr.mxu0 0.0
    %164 = vmatpush1.msra.mxu0 0.0
    %165 = vmatprep.subr.mxu0 0.0
    %166 = vmatpush1.msra.mxu0 0.0
    %167 = vmatprep.subr.mxu0 0.0
    %168 = vmatpush1.msra.mxu0 0.0
    %169 = vmatprep.subr.mxu0 0.0
    %170 = vmatpush1.msra.mxu0 0.0
    %171 = vmatprep.subr.mxu0 0.0
    %172 = vmatpush1.msra.mxu0 0.0
    %173 = vmatprep.subr.mxu0 0.0
    %174 = vmatpush1.msra.mxu0 0.0
    %175 = vmatprep.subr.mxu0 0.0
    %176 = vmatpush1.msra.mxu0 0.0
    %177 = vmatprep.subr.mxu0 0.0
    %178 = vmatpush1.msra.mxu0 0.0
    %179 = vmatprep.subr.mxu0 0.0
    %180 = vmatpush1.msra.mxu0 0.0
    %181 = vmatprep.subr.mxu0 0.0
    %182 = vmatpush1.msra.mxu0 0.0
    %183 = vmatprep.mubr.f32.mxu0 0.0
    %184 = vmatmul.mubr.f32.gmra.mrb[0].mxu0 %v94
    %v185 = vpop.f32.mrb[0].mxu0
    %v186 = vadd.f32 %v117, %v185
    %v187 = vpop.f32.mrb[0].mxu0
    %188 = vmatprep.mubr.f32.mxu0 0.0
    %189 = vmatmul.mubr.f32.gmra.mrb[0].mxu0 %v95
    %v190 = vpop.f32.mrb[0].mxu0
    %v191 = vadd.f32 %v117, %v190
    %v192 = vpop.f32.mrb[0].mxu0
    %193 = vdwg.mxu0
    %v194 = vld [vmem:[%s3] sm:$0x1]
    %v195 = vld [vmem:[%s4] sm:$0x1]
    %196 = vadd.xlane.f32.xlu0 %v186
    %v197 = vpop.xlane.xlu0 %196
    %198 = vadd.xlane.f32.xlu0 %v191
    %v199 = vpop.xlane.xlu0 %198
    %v200 = vmul.f32 %v186, %v186
    %v201 = vmul.f32 %v191, %v191
    %202 = vadd.xlane.f32.xlu0 %v200
    %v203 = vpop.xlane.xlu0 %202
    %204 = vadd.xlane.f32.xlu0 %v201
    %v205 = vpop.xlane.xlu0 %204
    %v206 = vmul.f32 %v197, 0.03125
    %v207 = vmul.f32 %v199, 0.03125
    %v208 = vmul.f32 %v203, 0.03125
    %v209 = vmul.f32 %v205, 0.03125
    %v210 = vmul.f32 %v206, %v206
    %v211 = vmul.f32 %v207, %v207
    %v212 = vsub.f32 %v208, %v210
    %v213 = vsub.f32 %v209, %v211
    %v214 = vmax.f32 %v212, 0.0
    %v215 = vmax.f32 %v213, 0.0
    %v216 = vsub.f32 %v186, %v206
    %v217 = vsub.f32 %v191, %v207
    %v218 = vadd.f32 %v214, 1e-05
    %v219 = vadd.f32 %v215, 1e-05
    %v220 = vrsqrt.pop %v218
    %v221 = vrsqrt.pop %v219
    %v222 = vmul.f32 %v216, %v220
    %v223 = vmul.f32 %v217, %v221
    %v225 = vlaneseq
    %v226 = vshrl.u32 %v225, 7
    %v227 = vsub.s32 0, %v226
    %v228 = vrot.slane %v194, %v227
    %v230 = vmul.f32 %v222, %v228
    %v231 = vmul.f32 %v223, %v228
    %v233 = vlaneseq
    %v234 = vshrl.u32 %v233, 7
    %v235 = vsub.s32 0, %v234
    %v236 = vrot.slane %v195, %v235
    %v238 = vadd.f32 %v230, %v236
    %v239 = vadd.f32 %v231, %v236
    %v240 = vmax.f32 %v238, 0.0
    %v241 = vmax.f32 %v239, 0.0
    %v242 = vld [vmem:[#allocation7] sm:$0xff]
    %v243 = vld [vmem:[#allocation7 + $0x8] sm:$0xff]
    %v244 = vld [vmem:[#allocation7 + $0x10] sm:$0xff]
    %v245 = vld [vmem:[#allocation7 + $0x18] sm:$0xff]
    %v246 = vld [vmem:[#allocation7 + $0x20] sm:$0xff]
    %v247 = vld [vmem:[#allocation7 + $0x28] sm:$0xff]
    %v248 = vld [vmem:[#allocation7 + $0x30] sm:$0xff]
    %v249 = vld [vmem:[#allocation7 + $0x38] sm:$0xff]
    %v250 = vld [vmem:[#allocation7 + $0x40] sm:$0xff]
    %v251 = vld [vmem:[#allocation7 + $0x48] sm:$0xff]
    %v252 = vld [vmem:[#allocation7 + $0x50] sm:$0xff]
    %v253 = vld [vmem:[#allocation7 + $0x58] sm:$0xff]
    %v254 = vld [vmem:[#allocation7 + $0x60] sm:$0xff]
    %v255 = vld [vmem:[#allocation7 + $0x68] sm:$0xff]
    %v256 = vld [vmem:[#allocation7 + $0x70] sm:$0xff]
    %v257 = vld [vmem:[#allocation7 + $0x78] sm:$0xff]
    %v258 = vld [vmem:[%s6] sm:$0x1]
    %v260 = vlaneseq
    %v261 = vshrl.u32 %v260, 7
    %v262 = vsub.s32 0, %v261
    %v263 = vrot.slane %v258, %v262
    %265 = vmatprep.subr.mxu0 0.0
    %266 = vmatpush1.msra.mxu0 %v242
    %267 = vmatprep.subr.mxu0 0.0
    %268 = vmatpush1.msra.mxu0 %v243
    %269 = vmatprep.subr.mxu0 0.0
    %270 = vmatpush1.msra.mxu0 %v244
    %271 = vmatprep.subr.mxu0 0.0
    %272 = vmatpush1.msra.mxu0 %v245
    %273 = vmatprep.subr.mxu0 0.0
    %274 = vmatpush1.msra.mxu0 %v246
    %275 = vmatprep.subr.mxu0 0.0
    %276 = vmatpush1.msra.mxu0 %v247
    %277 = vmatprep.subr.mxu0 0.0
    %278 = vmatpush1.msra.mxu0 %v248
    %279 = vmatprep.subr.mxu0 0.0
    %280 = vmatpush1.msra.mxu0 %v249
    %281 = vmatprep.subr.mxu0 0.0
    %282 = vmatpush1.msra.mxu0 %v250
    %283 = vmatprep.subr.mxu0 0.0
    %284 = vmatpush1.msra.mxu0 %v251
    %285 = vmatprep.subr.mxu0 0.0
    %286 = vmatpush1.msra.mxu0 %v252
    %287 = vmatprep.subr.mxu0 0.0
    %288 = vmatpush1.msra.mxu0 %v253
    %289 = vmatprep.subr.mxu0 0.0
    %290 = vmatpush1.msra.mxu0 %v254
    %291 = vmatprep.subr.mxu0 0.0
    %292 = vmatpush1.msra.mxu0 %v255
    %293 = vmatprep.subr.mxu0 0.0
    %294 = vmatpush1.msra.mxu0 %v256
    %295 = vmatprep.subr.mxu0 0.0
    %296 = vmatpush1.msra.mxu0 %v257
    %297 = vmatprep.subr.mxu0 0.0
    %298 = vmatpush1.msra.mxu0 0.0
    %299 = vmatprep.subr.mxu0 0.0
    %300 = vmatpush1.msra.mxu0 0.0
    %301 = vmatprep.subr.mxu0 0.0
    %302 = vmatpush1.msra.mxu0 0.0
    %303 = vmatprep.subr.mxu0 0.0
    %304 = vmatpush1.msra.mxu0 0.0
    %305 = vmatprep.subr.mxu0 0.0
    %306 = vmatpush1.msra.mxu0 0.0
    %307 = vmatprep.subr.mxu0 0.0
    %308 = vmatpush1.msra.mxu0 0.0
    %309 = vmatprep.subr.mxu0 0.0
    %310 = vmatpush1.msra.mxu0 0.0
    %311 = vmatprep.subr.mxu0 0.0
    %312 = vmatpush1.msra.mxu0 0.0
    %313 = vmatprep.subr.mxu0 0.0
    %314 = vmatpush1.msra.mxu0 0.0
    %315 = vmatprep.subr.mxu0 0.0
    %316 = vmatpush1.msra.mxu0 0.0
    %317 = vmatprep.subr.mxu0 0.0
    %318 = vmatpush1.msra.mxu0 0.0
    %319 = vmatprep.subr.mxu0 0.0
    %320 = vmatpush1.msra.mxu0 0.0
    %321 = vmatprep.subr.mxu0 0.0
    %322 = vmatpush1.msra.mxu0 0.0
    %323 = vmatprep.subr.mxu0 0.0
    %324 = vmatpush1.msra.mxu0 0.0
    %325 = vmatprep.subr.mxu0 0.0
    %326 = vmatpush1.msra.mxu0 0.0
    %327 = vmatprep.subr.mxu0 0.0
    %328 = vmatpush1.msra.mxu0 0.0
    %329 = vmatprep.mubr.f32.mxu0 0.0
    %330 = vmatmul.mubr.f32.gmra.mrb[0].mxu0 %v240
    %v331 = vpop.f32.mrb[0].mxu0
    %v332 = vadd.f32 %v263, %v331
    %v333 = vpop.f32.mrb[0].mxu0
    %334 = vmatprep.mubr.f32.mxu0 0.0
    %335 = vmatmul.mubr.f32.gmra.mrb[0].mxu0 %v241
    %v336 = vpop.f32.mrb[0].mxu0
    %v337 = vadd.f32 %v263, %v336
    %v338 = vpop.f32.mrb[0].mxu0
    %339 = vdwg.mxu0
    %v340 = vld [vmem:[%s7] sm:$0x1]
    %v341 = vld [vmem:[%s8] sm:$0x1]
    %342 = vadd.xlane.f32.xlu0 %v332
    %v343 = vpop.xlane.xlu0 %342
    %344 = vadd.xlane.f32.xlu0 %v337
    %v345 = vpop.xlane.xlu0 %344
    %v346 = vmul.f32 %v332, %v332
    %v347 = vmul.f32 %v337, %v337
    %348 = vadd.xlane.f32.xlu0 %v346
    %v349 = vpop.xlane.xlu0 %348
    %350 = vadd.xlane.f32.xlu0 %v347
    %v351 = vpop.xlane.xlu0 %350
    %v352 = vmul.f32 %v343, 0.03125
    %v353 = vmul.f32 %v345, 0.03125
    %v354 = vmul.f32 %v349, 0.03125
    %v355 = vmul.f32 %v351, 0.03125
    %v356 = vmul.f32 %v352, %v352
    %v357 = vmul.f32 %v353, %v353
    %v358 = vsub.f32 %v354, %v356
    %v359 = vsub.f32 %v355, %v357
    %v360 = vmax.f32 %v358, 0.0
    %v361 = vmax.f32 %v359, 0.0
    %v362 = vsub.f32 %v332, %v352
    %v363 = vsub.f32 %v337, %v353
    %v364 = vadd.f32 %v360, 1e-05
    %v365 = vadd.f32 %v361, 1e-05
    %v366 = vrsqrt.pop %v364
    %v367 = vrsqrt.pop %v365
    %v368 = vmul.f32 %v362, %v366
    %v369 = vmul.f32 %v363, %v367
    %v371 = vlaneseq
    %v372 = vshrl.u32 %v371, 7
    %v373 = vsub.s32 0, %v372
    %v374 = vrot.slane %v340, %v373
    %v376 = vmul.f32 %v368, %v374
    %v377 = vmul.f32 %v369, %v374
    %v379 = vlaneseq
    %v380 = vshrl.u32 %v379, 7
    %v381 = vsub.s32 0, %v380
    %v382 = vrot.slane %v341, %v381
    %v384 = vadd.f32 %v376, %v382
    %v385 = vadd.f32 %v377, %v382
    %v386 = vmax.f32 %v384, 0.0
    %v387 = vmax.f32 %v385, 0.0
    %v388 = vld [vmem:[#allocation8] sm:$0xff]
    %v389 = vld [vmem:[#allocation8 + $0x8] sm:$0xff]
    %v390 = vld [vmem:[#allocation8 + $0x10] sm:$0xff]
    %v391 = vld [vmem:[#allocation8 + $0x18] sm:$0xff]
    %v392 = vld [vmem:[#allocation8 + $0x20] sm:$0xff]
    %v393 = vld [vmem:[#allocation8 + $0x28] sm:$0xff]
    %v394 = vld [vmem:[#allocation8 + $0x30] sm:$0xff]
    %v395 = vld [vmem:[#allocation8 + $0x38] sm:$0xff]
    %v396 = vld [vmem:[#allocation8 + $0x40] sm:$0xff]
    %v397 = vld [vmem:[#allocation8 + $0x48] sm:$0xff]
    %v398 = vld [vmem:[#allocation8 + $0x50] sm:$0xff]
    %v399 = vld [vmem:[#allocation8 + $0x58] sm:$0xff]
    %v400 = vld [vmem:[#allocation8 + $0x60] sm:$0xff]
    %v401 = vld [vmem:[#allocation8 + $0x68] sm:$0xff]
    %v402 = vld [vmem:[#allocation8 + $0x70] sm:$0xff]
    %v403 = vld [vmem:[#allocation8 + $0x78] sm:$0xff]
    %v404 = vld [vmem:[%s10] sm:$0x1]
    %v406 = vlaneseq
    %v407 = vshrl.u32 %v406, 7
    %v408 = vsub.s32 0, %v407
    %v409 = vrot.slane %v404, %v408
    %411 = vmatprep.subr.mxu0 0.0
    %412 = vmatpush1.msra.mxu0 %v388
    %413 = vmatprep.subr.mxu0 0.0
    %414 = vmatpush1.msra.mxu0 %v389
    %415 = vmatprep.subr.mxu0 0.0
    %416 = vmatpush1.msra.mxu0 %v390
    %417 = vmatprep.subr.mxu0 0.0
    %418 = vmatpush1.msra.mxu0 %v391
    %419 = vmatprep.subr.mxu0 0.0
    %420 = vmatpush1.msra.mxu0 %v392
    %421 = vmatprep.subr.mxu0 0.0
    %422 = vmatpush1.msra.mxu0 %v393
    %423 = vmatprep.subr.mxu0 0.0
    %424 = vmatpush1.msra.mxu0 %v394
    %425 = vmatprep.subr.mxu0 0.0
    %426 = vmatpush1.msra.mxu0 %v395
    %427 = vmatprep.subr.mxu0 0.0
    %428 = vmatpush1.msra.mxu0 %v396
    %429 = vmatprep.subr.mxu0 0.0
    %430 = vmatpush1.msra.mxu0 %v397
    %431 = vmatprep.subr.mxu0 0.0
    %432 = vmatpush1.msra.mxu0 %v398
    %433 = vmatprep.subr.mxu0 0.0
    %434 = vmatpush1.msra.mxu0 %v399
    %435 = vmatprep.subr.mxu0 0.0
    %436 = vmatpush1.msra.mxu0 %v400
    %437 = vmatprep.subr.mxu0 0.0
    %438 = vmatpush1.msra.mxu0 %v401
    %439 = vmatprep.subr.mxu0 0.0
    %440 = vmatpush1.msra.mxu0 %v402
    %441 = vmatprep.subr.mxu0 0.0
    %442 = vmatpush1.msra.mxu0 %v403
    %443 = vmatprep.subr.mxu0 0.0
    %444 = vmatpush1.msra.mxu0 0.0
    %445 = vmatprep.subr.mxu0 0.0
    %446 = vmatpush1.msra.mxu0 0.0
    %447 = vmatprep.subr.mxu0 0.0
    %448 = vmatpush1.msra.mxu0 0.0
    %449 = vmatprep.subr.mxu0 0.0
    %450 = vmatpush1.msra.mxu0 0.0
    %451 = vmatprep.subr.mxu0 0.0
    %452 = vmatpush1.msra.mxu0 0.0
    %453 = vmatprep.subr.mxu0 0.0
    %454 = vmatpush1.msra.mxu0 0.0
    %455 = vmatprep.subr.mxu0 0.0
    %456 = vmatpush1.msra.mxu0 0.0
    %457 = vmatprep.subr.mxu0 0.0
    %458 = vmatpush1.msra.mxu0 0.0
    %459 = vmatprep.subr.mxu0 0.0
    %460 = vmatpush1.msra.mxu0 0.0
    %461 = vmatprep.subr.mxu0 0.0
    %462 = vmatpush1.msra.mxu0 0.0
    %463 = vmatprep.subr.mxu0 0.0
    %464 = vmatpush1.msra.mxu0 0.0
    %465 = vmatprep.subr.mxu0 0.0
    %466 = vmatpush1.msra.mxu0 0.0
    %467 = vmatprep.subr.mxu0 0.0
    %468 = vmatpush1.msra.mxu0 0.0
    %469 = vmatprep.subr.mxu0 0.0
    %470 = vmatpush1.msra.mxu0 0.0
    %471 = vmatprep.subr.mxu0 0.0
    %472 = vmatpush1.msra.mxu0 0.0
    %473 = vmatprep.subr.mxu0 0.0
    %474 = vmatpush1.msra.mxu0 0.0
    %475 = vmatprep.mubr.f32.mxu0 0.0
    %476 = vmatmul.mubr.f32.gmra.mrb[0].mxu0 %v386
    %v477 = vpop.f32.mrb[0].mxu0
    %v478 = vadd.f32 %v409, %v477
    %v479 = vpop.f32.mrb[0].mxu0
    %480 = vmatprep.mubr.f32.mxu0 0.0
    %481 = vmatmul.mubr.f32.gmra.mrb[0].mxu0 %v387
    %v482 = vpop.f32.mrb[0].mxu0
    %v483 = vadd.f32 %v409, %v482
    %v484 = vpop.f32.mrb[0].mxu0
    %485 = vdwg.mxu0
    %v486 = vtanh.pop %v478
    %v487 = vtanh.pop %v483
    %488 = vst [vmem:[#allocation10] sm:$0xff] %v486
    %489 = vst [vmem:[#allocation10 + $0x8] sm:$0xff] %v487
    // Predicated region
    $region62: #{tpu_custom_call.1} parent=1 // pred_check
      _
    $region63: #{tpu_custom_call.1} parent=1 // pred_check_branch
      %491 = sbr.rel (0) target = $region65
    $region64: #{tpu_custom_call.1} parent=1 // pred_region
      %s493 = ssub.s32 256, 256
      %494 = vsyncadd [#allocation4], %s493
      %s495 = sshll.u32 [#allocation10], 4
      %s496 = int_to_ptr.vmem [resolvable:$true] %s495
      %501 = dma.vmem_to_hbm [thread:$0]  %s496, 256, %s11, [#allocation4], 128, 128, 8
    $region65: #{tpu_custom_call.1} parent=1 // pred_fallthru
      _
    // Predicated region
    $region66: #{tpu_custom_call.1} parent=1 // pred_check
      _
    $region67: #{tpu_custom_call.1} parent=1 // pred_check_branch
      %503 = sbr.rel (0) target = $region69
    $region68: #{tpu_custom_call.1} parent=1 // pred_region
      %504 = dma.done [#allocation4], 256
    $region69: #{tpu_custom_call.1} parent=1 // pred_fallthru
      _
    %505 = vsyncpa [#allocation3], 1
    %506 = vsyncpa [#allocation6], 1
    %507 = vsyncpa [#allocation9], 1
    %508 = vsyncpa [#allocation4], 1

// kernel: tpu_custom_call.1
$region0: #{tpu_custom_call.1}
  #allocation0 [shape = 'u32[]', space=smem, size = 0x4, offset = 0x4, fixed_abs, tag = 'smem constant byte address 0x4 - core index']
  #allocation1 [shape = 'u32[144,128]{1,0:T(1,128)}', space=vmem, size = 0x12000, scoped, tag = 'internal scratch']
  %s0 = inlined_call_operand.hbm [shape: f32[16,128], index: 0, kind: input, shape index: {}]
  %s1 = inlined_call_operand.hbm [shape: f32[128,128], index: 1, kind: input, shape index: {}]
  %s2 = inlined_call_operand.vmem [shape: f32[1,128], index: 2, kind: input, shape index: {}]
  %s3 = inlined_call_operand.vmem [shape: f32[1,128], index: 3, kind: input, shape index: {}]
  %s4 = inlined_call_operand.vmem [shape: f32[1,128], index: 4, kind: input, shape index: {}]
  %s5 = inlined_call_operand.hbm [shape: f32[128,128], index: 5, kind: input, shape index: {}]
  %s6 = inlined_call_operand.vmem [shape: f32[1,128], index: 6, kind: input, shape index: {}]
  %s7 = inlined_call_operand.vmem [shape: f32[1,128], index: 7, kind: input, shape index: {}]
  %s8 = inlined_call_operand.vmem [shape: f32[1,128], index: 8, kind: input, shape index: {}]
  %s9 = inlined_call_operand.hbm [shape: f32[128,128], index: 9, kind: input, shape index: {}]
  %s10 = inlined_call_operand.vmem [shape: f32[1,128], index: 10, kind: input, shape index: {}]
  %s11 = inlined_call_operand.hbm [shape: f32[16,128], index: 11, kind: output, shape index: {}]
  %s12 = sld [smem:[#allocation0]]
  $region70: #{tpu_custom_call.1} parent=0
    _
  %s14 = ssub.s32 1, %s12
  %s15 = scalar_select 0, %s14, %s12
  $region1: #{tpu_custom_call.1} parent=0
    #allocation2 [shape = 'u8[8192]{0}', space=vmem, size = 0x2000, scoped, tag = 'input window, operand 0, single buffered']
    #allocation3 [shape = 's32[1]{0}', space=sflag, size = 0x4, scoped, tag = 'scoped memory for tpu_custom_call.1']
    #allocation4 [shape = 's32[1]{0}', space=sflag, size = 0x4, scoped, tag = 'scoped memory for tpu_custom_call.1']
    #allocation5 [shape = 'u8[65536]{0}', space=vmem, size = 0x10000, scoped, tag = 'input window, operand 1, single buffered']
    #allocation6 [shape = 's32[1]{0}', space=sflag, size = 0x4, scoped, tag = 'scoped memory for tpu_custom_call.1']
    #allocation7 [shape = 'u8[65536]{0}', space=vmem, size = 0x10000, scoped, tag = 'input window, operand 5, single buffered']
    #allocation8 [shape = 'u8[65536]{0}', space=vmem, size = 0x10000, scoped, tag = 'input window, operand 9, single buffered']
    #allocation9 [shape = 's32[1]{0}', space=sflag, size = 0x4, scoped, tag = 'scoped memory for tpu_custom_call.1']
    #allocation10 [shape = 'u8[8192]{0}', space=vmem, size = 0x2000, scoped, tag = 'output window, operand 0, single buffered']
    %16 = vsyncpa [#allocation3], 0
    %17 = vsyncpa [#allocation6], 0
    %18 = vsyncpa [#allocation9], 0
    %19 = vsyncpa [#allocation4], 0
    // Predicated region
    $region2: #{tpu_custom_call.1} parent=1 // pred_check
      _
    $region3: #{tpu_custom_call.1} parent=1 // pred_check_branch
      %21 = sbr.rel (0) target = $region5
    $region4: #{tpu_custom_call.1} parent=1 // pred_region
      %s23 = ssub.s32 256, 256
      %24 = vsyncadd [#allocation3], %s23
      %s25 = sshll.u32 [#allocation2], 4
      %s26 = int_to_ptr.vmem [resolvable:$true] %s25
      %31 = dma.hbm_to_vmem [thread:$0]  %s0, 256, %s26, [#allocation3], 128, 128, 8
    $region5: #{tpu_custom_call.1} parent=1 // pred_fallthru
      _
    // Predicated region
    $region6: #{tpu_custom_call.1} parent=1 // pred_check
      _
    $region7: #{tpu_custom_call.1} parent=1 // pred_check_branch
      %33 = sbr.rel (0) target = $region9
    $region8: #{tpu_custom_call.1} parent=1 // pred_region
      %s35 = ssub.s32 2048, 2048
      %36 = vsyncadd [#allocation6], %s35
      %s37 = sshll.u32 [#allocation5], 4
      %s38 = int_to_ptr.vmem [resolvable:$true] %s37
      %43 = dma.hbm_to_vmem [thread:$0]  %s1, 2048, %s38, [#allocation6], 128, 128, 8
    $region9: #{tpu_custom_call.1} parent=1 // pred_fallthru
      _
    // Predicated region
    $region10: #{tpu_custom_call.1} parent=1 // pred_check
      _
    $region11: #{tpu_custom_call.1} parent=1 // pred_check_branch
      %45 = sbr.rel (0) target = $region13
    $region12: #{tpu_custom_call.1} parent=1 // pred_region
      _
    $region13: #{tpu_custom_call.1} parent=1 // pred_fallthru
      _
    // Predicated region
    $region14: #{tpu_custom_call.1} parent=1 // pred_check
      _
    $region15: #{tpu_custom_call.1} parent=1 // pred_check_branch
      %47 = sbr.rel (0) target = $region17
    $region16: #{tpu_custom_call.1} parent=1 // pred_region
      _
    $region17: #{tpu_custom_call.1} parent=1 // pred_fallthru
      _
    // Predicated region
    $region18: #{tpu_custom_call.1} parent=1 // pred_check
      _
    $region19: #{tpu_custom_call.1} parent=1 // pred_check_branch
      %49 = sbr.rel (0) target = $region21
    $region20: #{tpu_custom_call.1} parent=1 // pred_region
      _
    $region21: #{tpu_custom_call.1} parent=1 // pred_fallthru
      _
    // Predicated region
    $region22: #{tpu_custom_call.1} parent=1 // pred_check
      _
    $region23: #{tpu_custom_call.1} parent=1 // pred_check_branch
      %51 = sbr.rel (0) target = $region25
    $region24: #{tpu_custom_call.1} parent=1 // pred_region
      %s53 = ssub.s32 2048, 2048
      %54 = vsyncadd [#allocation6], %s53
      %s55 = sshll.u32 [#allocation7], 4
      %s56 = int_to_ptr.vmem [resolvable:$true] %s55
      %61 = dma.hbm_to_vmem [thread:$0]  %s5, 2048, %s56, [#allocation6], 128, 128, 8
    $region25: #{tpu_custom_call.1} parent=1 // pred_fallthru
      _
    // Predicated region
    $region26: #{tpu_custom_call.1} parent=1 // pred_check
      _
    $region27: #{tpu_custom_call.1} parent=1 // pred_check_branch
      %63 = sbr.rel (0) target = $region29
    $region28: #{tpu_custom_call.1} parent=1 // pred_region
      _
    $region29: #{tpu_custom_call.1} parent=1 // pred_fallthru
      _
    // Predicated region
    $region30: #{tpu_custom_call.1} parent=1 // pred_check
      _
    $region31: #{tpu_custom_call.1} parent=1 // pred_check_branch
      %65 = sbr.rel (0) target = $region33
    $region32: #{tpu_custom_call.1} parent=1 // pred_region
      _
    $region33: #{tpu_custom_call.1} parent=1 // pred_fallthru
      _
    // Predicated region
    $region34: #{tpu_custom_call.1} parent=1 // pred_check
      _
    $region35: #{tpu_custom_call.1} parent=1 // pred_check_branch
      %67 = sbr.rel (0) target = $region37
    $region36: #{tpu_custom_call.1} parent=1 // pred_region
      _
    $region37: #{tpu_custom_call.1} parent=1 // pred_fallthru
      _
    // Predicated region
    $region38: #{tpu_custom_call.1} parent=1 // pred_check
      _
    $region39: #{tpu_custom_call.1} parent=1 // pred_check_branch
      %69 = sbr.rel (0) target = $region41
    $region40: #{tpu_custom_call.1} parent=1 // pred_region
      %s71 = ssub.s32 2048, 2048
      %72 = vsyncadd [#allocation9], %s71
      %s73 = sshll.u32 [#allocation8], 4
      %s74 = int_to_ptr.vmem [resolvable:$true] %s73
      %79 = dma.hbm_to_vmem [thread:$0]  %s9, 2048, %s74, [#allocation9], 128, 128, 8
    $region41: #{tpu_custom_call.1} parent=1 // pred_fallthru
      _
    // Predicated region
    $region42: #{tpu_custom_call.1} parent=1 // pred_check
      _
    $region43: #{tpu_custom_call.1} parent=1 // pred_check_branch
      %81 = sbr.rel (0) target = $region45
    $region44: #{tpu_custom_call.1} parent=1 // pred_region
      _
    $region45: #{tpu_custom_call.1} parent=1 // pred_fallthru
      _
    // Predicated region
    $region46: #{tpu_custom_call.1} parent=1 // pred_check
      _
    $region47: #{tpu_custom_call.1} parent=1 // pred_check_branch
      %83 = sbr.rel (0) target = $region49
    $region48: #{tpu_custom_call.1} parent=1 // pred_region
      %84 = dma.done [#allocation3], 256
    $region49: #{tpu_custom_call.1} parent=1 // pred_fallthru
      _
    // Predicated region
    $region50: #{tpu_custom_call.1} parent=1 // pred_check
      _
    $region51: #{tpu_custom_call.1} parent=1 // pred_check_branch
      %86 = sbr.rel (0) target = $region53
    $region52: #{tpu_custom_call.1} parent=1 // pred_region
      %87 = dma.done [#allocation6], 2048
    $region53: #{tpu_custom_call.1} parent=1 // pred_fallthru
      _
    // Predicated region
    $region54: #{tpu_custom_call.1} parent=1 // pred_check
      _
    $region55: #{tpu_custom_call.1} parent=1 // pred_check_branch
      %89 = sbr.rel (0) target = $region57
    $region56: #{tpu_custom_call.1} parent=1 // pred_region
      %90 = dma.done [#allocation6], 2048
    $region57: #{tpu_custom_call.1} parent=1 // pred_fallthru
      _
    // Predicated region
    $region58: #{tpu_custom_call.1} parent=1 // pred_check
      _
    $region59: #{tpu_custom_call.1} parent=1 // pred_check_branch
      %92 = sbr.rel (0) target = $region61
    $region60: #{tpu_custom_call.1} parent=1 // pred_region
      %93 = dma.done [#allocation9], 2048
    $region61: #{tpu_custom_call.1} parent=1 // pred_fallthru
      _
    %v94 = vld [vmem:[#allocation2] sm:$0xff]
    %v95 = vld [vmem:[#allocation2 + $0x8] sm:$0xff]
    %v96 = vld [vmem:[#allocation5] sm:$0xff]
    %v97 = vld [vmem:[#allocation5 + $0x8] sm:$0xff]
    %v98 = vld [vmem:[#allocation5 + $0x10] sm:$0xff]
    %v99 = vld [vmem:[#allocation5 + $0x18] sm:$0xff]
    %v100 = vld [vmem:[#allocation5 + $0x20] sm:$0xff]
    %v101 = vld [vmem:[#allocation5 + $0x28] sm:$0xff]
    %v102 = vld [vmem:[#allocation5 + $0x30] sm:$0xff]
    %v103 = vld [vmem:[#allocation5 + $0x38] sm:$0xff]
    %v104 = vld [vmem:[#allocation5 + $0x40] sm:$0xff]
    %v105 = vld [vmem:[#allocation5 + $0x48] sm:$0xff]
    %v106 = vld [vmem:[#allocation5 + $0x50] sm:$0xff]
    %v107 = vld [vmem:[#allocation5 + $0x58] sm:$0xff]
    %v108 = vld [vmem:[#allocation5 + $0x60] sm:$0xff]
    %v109 = vld [vmem:[#allocation5 + $0x68] sm:$0xff]
    %v110 = vld [vmem:[#allocation5 + $0x70] sm:$0xff]
    %v111 = vld [vmem:[#allocation5 + $0x78] sm:$0xff]
    %v112 = vld [vmem:[%s2] sm:$0x1]
    %v114 = vlaneseq
    %v115 = vshrl.u32 %v114, 7
    %v116 = vsub.s32 0, %v115
    %v117 = vrot.slane %v112, %v116
    %119 = vmatprep.subr.mxu0 0.0
    %120 = vmatpush1.msra.mxu0 %v96
    %121 = vmatprep.subr.mxu0 0.0
    %122 = vmatpush1.msra.mxu0 %v97
    %123 = vmatprep.subr.mxu0 0.0
    %124 = vmatpush1.msra.mxu0 %v98
    %125 = vmatprep.subr.mxu0 0.0
    %126 = vmatpush1.msra.mxu0 %v99
    %127 = vmatprep.subr.mxu0 0.0
    %128 = vmatpush1.msra.mxu0 %v100
    %129 = vmatprep.subr.mxu0 0.0
    %130 = vmatpush1.msra.mxu0 %v101
    %131 = vmatprep.subr.mxu0 0.0
    %132 = vmatpush1.msra.mxu0 %v102
    %133 = vmatprep.subr.mxu0 0.0
    %134 = vmatpush1.msra.mxu0 %v103
    %135 = vmatprep.subr.mxu0 0.0
    %136 = vmatpush1.msra.mxu0 %v104
    %137 = vmatprep.subr.mxu0 0.0
    %138 = vmatpush1.msra.mxu0 %v105
    %139 = vmatprep.subr.mxu0 0.0
    %140 = vmatpush1.msra.mxu0 %v106
    %141 = vmatprep.subr.mxu0 0.0
    %142 = vmatpush1.msra.mxu0 %v107
    %143 = vmatprep.subr.mxu0 0.0
    %144 = vmatpush1.msra.mxu0 %v108
    %145 = vmatprep.subr.mxu0 0.0
    %146 = vmatpush1.msra.mxu0 %v109
    %147 = vmatprep.subr.mxu0 0.0
    %148 = vmatpush1.msra.mxu0 %v110
    %149 = vmatprep.subr.mxu0 0.0
    %150 = vmatpush1.msra.mxu0 %v111
    %151 = vmatprep.subr.mxu0 0.0
    %152 = vmatpush1.msra.mxu0 0.0
    %153 = vmatprep.subr.mxu0 0.0
    %154 = vmatpush1.msra.mxu0 0.0
    %155 = vmatprep.subr.mxu0 0.0
    %156 = vmatpush1.msra.mxu0 0.0
    %157 = vmatprep.subr.mxu0 0.0
    %158 = vmatpush1.msra.mxu0 0.0
    %159 = vmatprep.subr.mxu0 0.0
    %160 = vmatpush1.msra.mxu0 0.0
    %161 = vmatprep.subr.mxu0 0.0
    %162 = vmatpush1.msra.mxu0 0.0
    %163 = vmatprep.subr.mxu0 0.0
    %164 = vmatpush1.msra.mxu0 0.0
    %165 = vmatprep.subr.mxu0 0.0
    %166 = vmatpush1.msra.mxu0 0.0
    %167 = vmatprep.subr.mxu0 0.0
    %168 = vmatpush1.msra.mxu0 0.0
    %169 = vmatprep.subr.mxu0 0.0
    %170 = vmatpush1.msra.mxu0 0.0
    %171 = vmatprep.subr.mxu0 0.0
    %172 = vmatpush1.msra.mxu0 0.0
    %173 = vmatprep.subr.mxu0 0.0
    %174 = vmatpush1.msra.mxu0 0.0
    %175 = vmatprep.subr.mxu0 0.0
    %176 = vmatpush1.msra.mxu0 0.0
    %177 = vmatprep.subr.mxu0 0.0
    %178 = vmatpush1.msra.mxu0 0.0
    %179 = vmatprep.subr.mxu0 0.0
    %180 = vmatpush1.msra.mxu0 0.0
    %181 = vmatprep.subr.mxu0 0.0
    %182 = vmatpush1.msra.mxu0 0.0
    %183 = vmatprep.mubr.f32.mxu0 0.0
    %184 = vmatmul.mubr.f32.gmra.mrb[0].mxu0 %v94
    %v185 = vpop.f32.mrb[0].mxu0
    %v186 = vadd.f32 %v117, %v185
    %v187 = vpop.f32.mrb[0].mxu0
    %188 = vmatprep.mubr.f32.mxu0 0.0
    %189 = vmatmul.mubr.f32.gmra.mrb[0].mxu0 %v95
    %v190 = vpop.f32.mrb[0].mxu0
    %v191 = vadd.f32 %v117, %v190
    %v192 = vpop.f32.mrb[0].mxu0
    %193 = vdwg.mxu0
    %v194 = vld [vmem:[%s3] sm:$0x1]
    %v195 = vld [vmem:[%s4] sm:$0x1]
    %196 = vadd.xlane.f32.xlu0 %v186
    %v197 = vpop.xlane.xlu0 %196
    %198 = vadd.xlane.f32.xlu0 %v191
    %v199 = vpop.xlane.xlu0 %198
    %v200 = vmul.f32 %v186, %v186
    %v201 = vmul.f32 %v191, %v191
    %202 = vadd.xlane.f32.xlu0 %v200
    %v203 = vpop.xlane.xlu0 %202
    %204 = vadd.xlane.f32.xlu0 %v201
    %v205 = vpop.xlane.xlu0 %204
    %v206 = vmul.f32 %v197, 0.03125
    %v207 = vmul.f32 %v199, 0.03125
    %v208 = vmul.f32 %v203, 0.03125
    %v209 = vmul.f32 %v205, 0.03125
    %v210 = vmul.f32 %v206, %v206
    %v211 = vmul.f32 %v207, %v207
    %v212 = vsub.f32 %v208, %v210
    %v213 = vsub.f32 %v209, %v211
    %v214 = vmax.f32 %v212, 0.0
    %v215 = vmax.f32 %v213, 0.0
    %v216 = vsub.f32 %v186, %v206
    %v217 = vsub.f32 %v191, %v207
    %v218 = vadd.f32 %v214, 1e-05
    %v219 = vadd.f32 %v215, 1e-05
    %v220 = vrsqrt.pop %v218
    %v221 = vrsqrt.pop %v219
    %v222 = vmul.f32 %v216, %v220
    %v223 = vmul.f32 %v217, %v221
    %v225 = vlaneseq
    %v226 = vshrl.u32 %v225, 7
    %v227 = vsub.s32 0, %v226
    %v228 = vrot.slane %v194, %v227
    %v230 = vmul.f32 %v222, %v228
    %v231 = vmul.f32 %v223, %v228
    %v233 = vlaneseq
    %v234 = vshrl.u32 %v233, 7
    %v235 = vsub.s32 0, %v234
    %v236 = vrot.slane %v195, %v235
    %v238 = vadd.f32 %v230, %v236
    %v239 = vadd.f32 %v231, %v236
    %v240 = vmax.f32 %v238, 0.0
    %v241 = vmax.f32 %v239, 0.0
    %v242 = vld [vmem:[#allocation7] sm:$0xff]
    %v243 = vld [vmem:[#allocation7 + $0x8] sm:$0xff]
    %v244 = vld [vmem:[#allocation7 + $0x10] sm:$0xff]
    %v245 = vld [vmem:[#allocation7 + $0x18] sm:$0xff]
    %v246 = vld [vmem:[#allocation7 + $0x20] sm:$0xff]
    %v247 = vld [vmem:[#allocation7 + $0x28] sm:$0xff]
    %v248 = vld [vmem:[#allocation7 + $0x30] sm:$0xff]
    %v249 = vld [vmem:[#allocation7 + $0x38] sm:$0xff]
    %v250 = vld [vmem:[#allocation7 + $0x40] sm:$0xff]
    %v251 = vld [vmem:[#allocation7 + $0x48] sm:$0xff]
    %v252 = vld [vmem:[#allocation7 + $0x50] sm:$0xff]
    %v253 = vld [vmem:[#allocation7 + $0x58] sm:$0xff]
    %v254 = vld [vmem:[#allocation7 + $0x60] sm:$0xff]
    %v255 = vld [vmem:[#allocation7 + $0x68] sm:$0xff]
    %v256 = vld [vmem:[#allocation7 + $0x70] sm:$0xff]
    %v257 = vld [vmem:[#allocation7 + $0x78] sm:$0xff]
    %v258 = vld [vmem:[%s6] sm:$0x1]
    %v260 = vlaneseq
    %v261 = vshrl.u32 %v260, 7
    %v262 = vsub.s32 0, %v261
    %v263 = vrot.slane %v258, %v262
    %265 = vmatprep.subr.mxu0 0.0
    %266 = vmatpush1.msra.mxu0 %v242
    %267 = vmatprep.subr.mxu0 0.0
    %268 = vmatpush1.msra.mxu0 %v243
    %269 = vmatprep.subr.mxu0 0.0
    %270 = vmatpush1.msra.mxu0 %v244
    %271 = vmatprep.subr.mxu0 0.0
    %272 = vmatpush1.msra.mxu0 %v245
    %273 = vmatprep.subr.mxu0 0.0
    %274 = vmatpush1.msra.mxu0 %v246
    %275 = vmatprep.subr.mxu0 0.0
    %276 = vmatpush1.msra.mxu0 %v247
    %277 = vmatprep.subr.mxu0 0.0
    %278 = vmatpush1.msra.mxu0 %v248
    %279 = vmatprep.subr.mxu0 0.0
    %280 = vmatpush1.msra.mxu0 %v249
    %281 = vmatprep.subr.mxu0 0.0
    %282 = vmatpush1.msra.mxu0 %v250
    %283 = vmatprep.subr.mxu0 0.0
    %284 = vmatpush1.msra.mxu0 %v251
    %285 = vmatprep.subr.mxu0 0.0
    %286 = vmatpush1.msra.mxu0 %v252
    %287 = vmatprep.subr.mxu0 0.0
    %288 = vmatpush1.msra.mxu0 %v253
    %289 = vmatprep.subr.mxu0 0.0
    %290 = vmatpush1.msra.mxu0 %v254
    %291 = vmatprep.subr.mxu0 0.0
    %292 = vmatpush1.msra.mxu0 %v255
    %293 = vmatprep.subr.mxu0 0.0
    %294 = vmatpush1.msra.mxu0 %v256
    %295 = vmatprep.subr.mxu0 0.0
    %296 = vmatpush1.msra.mxu0 %v257
    %297 = vmatprep.subr.mxu0 0.0
    %298 = vmatpush1.msra.mxu0 0.0
    %299 = vmatprep.subr.mxu0 0.0
    %300 = vmatpush1.msra.mxu0 0.0
    %301 = vmatprep.subr.mxu0 0.0
    %302 = vmatpush1.msra.mxu0 0.0
    %303 = vmatprep.subr.mxu0 0.0
    %304 = vmatpush1.msra.mxu0 0.0
    %305 = vmatprep.subr.mxu0 0.0
    %306 = vmatpush1.msra.mxu0 0.0
    %307 = vmatprep.subr.mxu0 0.0
    %308 = vmatpush1.msra.mxu0 0.0
    %309 = vmatprep.subr.mxu0 0.0
    %310 = vmatpush1.msra.mxu0 0.0
    %311 = vmatprep.subr.mxu0 0.0
    %312 = vmatpush1.msra.mxu0 0.0
    %313 = vmatprep.subr.mxu0 0.0
    %314 = vmatpush1.msra.mxu0 0.0
    %315 = vmatprep.subr.mxu0 0.0
    %316 = vmatpush1.msra.mxu0 0.0
    %317 = vmatprep.subr.mxu0 0.0
    %318 = vmatpush1.msra.mxu0 0.0
    %319 = vmatprep.subr.mxu0 0.0
    %320 = vmatpush1.msra.mxu0 0.0
    %321 = vmatprep.subr.mxu0 0.0
    %322 = vmatpush1.msra.mxu0 0.0
    %323 = vmatprep.subr.mxu0 0.0
    %324 = vmatpush1.msra.mxu0 0.0
    %325 = vmatprep.subr.mxu0 0.0
    %326 = vmatpush1.msra.mxu0 0.0
    %327 = vmatprep.subr.mxu0 0.0
    %328 = vmatpush1.msra.mxu0 0.0
    %329 = vmatprep.mubr.f32.mxu0 0.0
    %330 = vmatmul.mubr.f32.gmra.mrb[0].mxu0 %v240
    %v331 = vpop.f32.mrb[0].mxu0
    %v332 = vadd.f32 %v263, %v331
    %v333 = vpop.f32.mrb[0].mxu0
    %334 = vmatprep.mubr.f32.mxu0 0.0
    %335 = vmatmul.mubr.f32.gmra.mrb[0].mxu0 %v241
    %v336 = vpop.f32.mrb[0].mxu0
    %v337 = vadd.f32 %v263, %v336
    %v338 = vpop.f32.mrb[0].mxu0
    %339 = vdwg.mxu0
    %v340 = vld [vmem:[%s7] sm:$0x1]
    %v341 = vld [vmem:[%s8] sm:$0x1]
    %342 = vadd.xlane.f32.xlu0 %v332
    %v343 = vpop.xlane.xlu0 %342
    %344 = vadd.xlane.f32.xlu0 %v337
    %v345 = vpop.xlane.xlu0 %344
    %v346 = vmul.f32 %v332, %v332
    %v347 = vmul.f32 %v337, %v337
    %348 = vadd.xlane.f32.xlu0 %v346
    %v349 = vpop.xlane.xlu0 %348
    %350 = vadd.xlane.f32.xlu0 %v347
    %v351 = vpop.xlane.xlu0 %350
    %v352 = vmul.f32 %v343, 0.03125
    %v353 = vmul.f32 %v345, 0.03125
    %v354 = vmul.f32 %v349, 0.03125
    %v355 = vmul.f32 %v351, 0.03125
    %v356 = vmul.f32 %v352, %v352
    %v357 = vmul.f32 %v353, %v353
    %v358 = vsub.f32 %v354, %v356
    %v359 = vsub.f32 %v355, %v357
    %v360 = vmax.f32 %v358, 0.0
    %v361 = vmax.f32 %v359, 0.0
    %v362 = vsub.f32 %v332, %v352
    %v363 = vsub.f32 %v337, %v353
    %v364 = vadd.f32 %v360, 1e-05
    %v365 = vadd.f32 %v361, 1e-05
    %v366 = vrsqrt.pop %v364
    %v367 = vrsqrt.pop %v365
    %v368 = vmul.f32 %v362, %v366
    %v369 = vmul.f32 %v363, %v367
    %v371 = vlaneseq
    %v372 = vshrl.u32 %v371, 7
    %v373 = vsub.s32 0, %v372
    %v374 = vrot.slane %v340, %v373
    %v376 = vmul.f32 %v368, %v374
    %v377 = vmul.f32 %v369, %v374
    %v379 = vlaneseq
    %v380 = vshrl.u32 %v379, 7
    %v381 = vsub.s32 0, %v380
    %v382 = vrot.slane %v341, %v381
    %v384 = vadd.f32 %v376, %v382
    %v385 = vadd.f32 %v377, %v382
    %v386 = vmax.f32 %v384, 0.0
    %v387 = vmax.f32 %v385, 0.0
    %v388 = vld [vmem:[#allocation8] sm:$0xff]
    %v389 = vld [vmem:[#allocation8 + $0x8] sm:$0xff]
    %v390 = vld [vmem:[#allocation8 + $0x10] sm:$0xff]
    %v391 = vld [vmem:[#allocation8 + $0x18] sm:$0xff]
    %v392 = vld [vmem:[#allocation8 + $0x20] sm:$0xff]
    %v393 = vld [vmem:[#allocation8 + $0x28] sm:$0xff]
    %v394 = vld [vmem:[#allocation8 + $0x30] sm:$0xff]
    %v395 = vld [vmem:[#allocation8 + $0x38] sm:$0xff]
    %v396 = vld [vmem:[#allocation8 + $0x40] sm:$0xff]
    %v397 = vld [vmem:[#allocation8 + $0x48] sm:$0xff]
    %v398 = vld [vmem:[#allocation8 + $0x50] sm:$0xff]
    %v399 = vld [vmem:[#allocation8 + $0x58] sm:$0xff]
    %v400 = vld [vmem:[#allocation8 + $0x60] sm:$0xff]
    %v401 = vld [vmem:[#allocation8 + $0x68] sm:$0xff]
    %v402 = vld [vmem:[#allocation8 + $0x70] sm:$0xff]
    %v403 = vld [vmem:[#allocation8 + $0x78] sm:$0xff]
    %v404 = vld [vmem:[%s10] sm:$0x1]
    %v406 = vlaneseq
    %v407 = vshrl.u32 %v406, 7
    %v408 = vsub.s32 0, %v407
    %v409 = vrot.slane %v404, %v408
    %411 = vmatprep.subr.mxu0 0.0
    %412 = vmatpush1.msra.mxu0 %v388
    %413 = vmatprep.subr.mxu0 0.0
    %414 = vmatpush1.msra.mxu0 %v389
    %415 = vmatprep.subr.mxu0 0.0
    %416 = vmatpush1.msra.mxu0 %v390
    %417 = vmatprep.subr.mxu0 0.0
    %418 = vmatpush1.msra.mxu0 %v391
    %419 = vmatprep.subr.mxu0 0.0
    %420 = vmatpush1.msra.mxu0 %v392
    %421 = vmatprep.subr.mxu0 0.0
    %422 = vmatpush1.msra.mxu0 %v393
    %423 = vmatprep.subr.mxu0 0.0
    %424 = vmatpush1.msra.mxu0 %v394
    %425 = vmatprep.subr.mxu0 0.0
    %426 = vmatpush1.msra.mxu0 %v395
    %427 = vmatprep.subr.mxu0 0.0
    %428 = vmatpush1.msra.mxu0 %v396
    %429 = vmatprep.subr.mxu0 0.0
    %430 = vmatpush1.msra.mxu0 %v397
    %431 = vmatprep.subr.mxu0 0.0
    %432 = vmatpush1.msra.mxu0 %v398
    %433 = vmatprep.subr.mxu0 0.0
    %434 = vmatpush1.msra.mxu0 %v399
    %435 = vmatprep.subr.mxu0 0.0
    %436 = vmatpush1.msra.mxu0 %v400
    %437 = vmatprep.subr.mxu0 0.0
    %438 = vmatpush1.msra.mxu0 %v401
    %439 = vmatprep.subr.mxu0 0.0
    %440 = vmatpush1.msra.mxu0 %v402
    %441 = vmatprep.subr.mxu0 0.0
    %442 = vmatpush1.msra.mxu0 %v403
    %443 = vmatprep.subr.mxu0 0.0
    %444 = vmatpush1.msra.mxu0 0.0
    %445 = vmatprep.subr.mxu0 0.0
    %446 = vmatpush1.msra.mxu0 0.0
    %447 = vmatprep.subr.mxu0 0.0
    %448 = vmatpush1.msra.mxu0 0.0
    %449 = vmatprep.subr.mxu0 0.0
    %450 = vmatpush1.msra.mxu0 0.0
    %451 = vmatprep.subr.mxu0 0.0
    %452 = vmatpush1.msra.mxu0 0.0
    %453 = vmatprep.subr.mxu0 0.0
    %454 = vmatpush1.msra.mxu0 0.0
    %455 = vmatprep.subr.mxu0 0.0
    %456 = vmatpush1.msra.mxu0 0.0
    %457 = vmatprep.subr.mxu0 0.0
    %458 = vmatpush1.msra.mxu0 0.0
    %459 = vmatprep.subr.mxu0 0.0
    %460 = vmatpush1.msra.mxu0 0.0
    %461 = vmatprep.subr.mxu0 0.0
    %462 = vmatpush1.msra.mxu0 0.0
    %463 = vmatprep.subr.mxu0 0.0
    %464 = vmatpush1.msra.mxu0 0.0
    %465 = vmatprep.subr.mxu0 0.0
    %466 = vmatpush1.msra.mxu0 0.0
    %467 = vmatprep.subr.mxu0 0.0
    %468 = vmatpush1.msra.mxu0 0.0
    %469 = vmatprep.subr.mxu0 0.0
    %470 = vmatpush1.msra.mxu0 0.0
    %471 = vmatprep.subr.mxu0 0.0
    %472 = vmatpush1.msra.mxu0 0.0
    %473 = vmatprep.subr.mxu0 0.0
    %474 = vmatpush1.msra.mxu0 0.0
    %475 = vmatprep.mubr.f32.mxu0 0.0
    %476 = vmatmul.mubr.f32.gmra.mrb[0].mxu0 %v386
    %v477 = vpop.f32.mrb[0].mxu0
    %v478 = vadd.f32 %v409, %v477
    %v479 = vpop.f32.mrb[0].mxu0
    %480 = vmatprep.mubr.f32.mxu0 0.0
    %481 = vmatmul.mubr.f32.gmra.mrb[0].mxu0 %v387
    %v482 = vpop.f32.mrb[0].mxu0
    %v483 = vadd.f32 %v409, %v482
    %v484 = vpop.f32.mrb[0].mxu0
    %485 = vdwg.mxu0
    %v486 = vtanh.pop %v478
    %v487 = vtanh.pop %v483
    %488 = vst [vmem:[#allocation10] sm:$0xff] %v486
    %489 = vst [vmem:[#allocation10 + $0x8] sm:$0xff] %v487
    // Predicated region
    $region62: #{tpu_custom_call.1} parent=1 // pred_check
      _
    $region63: #{tpu_custom_call.1} parent=1 // pred_check_branch
      %491 = sbr.rel (0) target = $region65
    $region64: #{tpu_custom_call.1} parent=1 // pred_region
      %s493 = ssub.s32 256, 256
      %494 = vsyncadd [#allocation4], %s493
      %s495 = sshll.u32 [#allocation10], 4
      %s496 = int_to_ptr.vmem [resolvable:$true] %s495
      %501 = dma.vmem_to_hbm [thread:$0]  %s496, 256, %s11, [#allocation4], 128, 128, 8
    $region65: #{tpu_custom_call.1} parent=1 // pred_fallthru
      _
    // Predicated region
    $region66: #{tpu_custom_call.1} parent=1 // pred_check
      _
    $region67: #{tpu_custom_call.1} parent=1 // pred_check_branch
      %503 = sbr.rel (0) target = $region69
    $region68: #{tpu_custom_call.1} parent=1 // pred_region
      %504 = dma.done [#allocation4], 256
    $region69: #{tpu_custom_call.1} parent=1 // pred_fallthru
      _
    %505 = vsyncpa [#allocation3], 1
    %506 = vsyncpa [#allocation6], 1
    %507 = vsyncpa [#allocation9], 1
    %508 = vsyncpa [#allocation4], 1

</llo_original>
